<compile_context>
chip_gen: v7x
topology: tpu7x:2x2x1
jax: 0.10.0
libtpu: 0.0.40
codegen_flags: <defaults>
</compile_context>

<pallas_src>
import functools

import jax
import jax.numpy as jnp
from jax.experimental import pallas as pl
from jax.experimental.pallas import tpu as pltpu


NEG_INF = -1e30


def _dense_gat_layer(x, adj, ones_col, w, wa_src, wa_dst, heads, head_dim):
    """One multi-head (merge='cat') GAT layer on a dense adjacency."""
    n = adj.shape[0]
    width = heads * head_dim

    z = jnp.dot(x, w, preferred_element_type=jnp.float32)        # (N, heads*head_dim)
    s = jnp.dot(z, wa_src, preferred_element_type=jnp.float32)   # (N, heads) src scores
    d = jnp.dot(z, wa_dst, preferred_element_type=jnp.float32)   # (N, heads) dst scores

    col_ids = jax.lax.broadcasted_iota(jnp.int32, (1, width), 1)
    acc = jnp.zeros((n, width), jnp.float32)
    for hd in range(heads):                                      # static unroll (<= 4)
        s_h = s[:, hd:hd + 1]                                    # (N, 1)
        d_h = d[:, hd:hd + 1]                                    # (N, 1)
        # src_term[dst, src] = s_h[src]: outer product ones_col @ s_h^T on the
        # MXU (avoids an explicit in-kernel transpose / relayout).
        src_term = jax.lax.dot_general(
            ones_col, s_h, (((1,), (1,)), ((), ())),
            preferred_element_type=jnp.float32)                  # (N, N)
        e = d_h + src_term                                       # e[dst, src]
        e = jnp.where(e > 0, e, 0.01 * e)                        # LeakyReLU(0.01)
        e = jnp.where(adj > 0, e, NEG_INF)                       # mask non-edges
        e_max = jnp.max(e, axis=1, keepdims=True)
        p = jnp.exp(e - e_max) * adj                             # zero non-edges
        denom = jnp.sum(p, axis=1, keepdims=True)
        alpha = p / jnp.maximum(denom, 1e-30)                    # softmax over in-edges

        if heads == 1:
            z_sel = z
        else:
            head_mask = ((col_ids >= hd * head_dim) &
                         (col_ids < (hd + 1) * head_dim)).astype(jnp.float32)
            z_sel = z * head_mask                                # keep head hd's columns
        acc = acc + jnp.dot(alpha, z_sel, preferred_element_type=jnp.float32)
    return acc                                                   # == concat over heads


def gat_kernel(adj_ref, h_ref, w1_ref, a1s_ref, a1d_ref,
               w2_ref, a2s_ref, a2d_ref, o_ref,
               *, num_heads, hidden_dim, out_dim):
    adj = adj_ref[...]
    n = adj.shape[0]
    ones_col = jnp.ones((n, 1), jnp.float32)

    # layer 1: num_heads heads, merge='cat'
    h1 = _dense_gat_layer(h_ref[...], adj, ones_col,
                          w1_ref[...], a1s_ref[...], a1d_ref[...],
                          num_heads, hidden_dim)
    # dropout(p=0.1) -> identity at inference.
    # TODO(synk): training-mode dropout would use pltpu.prng_seed / prng_random_bits.
    h1 = jnp.where(h1 > 0, h1, jnp.exp(jnp.minimum(h1, 0.0)) - 1.0)   # ELU(alpha=1)
    # dropout(p=0.1) -> identity at inference.

    # layer 2: single head
    h2 = _dense_gat_layer(h1, adj, ones_col,
                          w2_ref[...], a2s_ref[...], a2d_ref[...],
                          1, out_dim)
    # dropout(p=0.1) -> identity at inference.
    o_ref[...] = h2


def gat_forward(adj, h, params, *, num_heads, hidden_dim, out_dim):
    w1, wa1_src, wa1_dst, w2, wa2_src, wa2_dst = params
    n = h.shape[0]
    kernel = functools.partial(gat_kernel, num_heads=num_heads,
                               hidden_dim=hidden_dim, out_dim=out_dim)
    vmem = lambda: pl.BlockSpec(memory_space=pltpu.MemorySpace.VMEM)
    return pl.pallas_call(
        kernel,
        out_shape=jax.ShapeDtypeStruct((n, out_dim), jnp.float32),
        in_specs=[vmem() for _ in range(8)],
        out_specs=vmem(),
    )(adj, h, w1, wa1_src, wa1_dst, w2, wa2_src, wa2_dst)


def _xavier_normal(key, shape, gain):
    fan_in, fan_out = shape
    std = gain * (2.0 / (fan_in + fan_out)) ** 0.5
    return std * jax.random.normal(key, shape, jnp.float32)


def init_gat_params(key, in_dim, hidden_dim, out_dim, num_heads):
    """Matches GATLayer.reset_parameters: xavier_normal_ with gain('relu')=sqrt(2)."""
    gain = 2.0 ** 0.5
    keys = jax.random.split(key, 2 * num_heads + 2)

    def block_diag(vecs, head_dim):
        m = jnp.zeros((len(vecs) * head_dim, len(vecs)), jnp.float32)
        for i, v in enumerate(vecs):
            m = m.at[i * head_dim:(i + 1) * head_dim, i].set(v)
        return m

    w1_blocks, a1_src, a1_dst = [], [], []
    for hd in range(num_heads):
        w = _xavier_normal(keys[2 * hd], (in_dim, hidden_dim), gain)      # fc.weight.T
        a = _xavier_normal(keys[2 * hd + 1], (2 * hidden_dim, 1), gain)   # attn_fc.weight.T
        w1_blocks.append(w)
        a1_src.append(a[:hidden_dim, 0])
        a1_dst.append(a[hidden_dim:, 0])
    w1 = jnp.concatenate(w1_blocks, axis=1)            # (in_dim, H*hid)
    wa1_src = block_diag(a1_src, hidden_dim)           # (H*hid, H) block-diagonal
    wa1_dst = block_diag(a1_dst, hidden_dim)

    in2 = num_heads * hidden_dim
    w2 = _xavier_normal(keys[-2], (in2, out_dim), gain)
    a2 = _xavier_normal(keys[-1], (2 * out_dim, 1), gain)
    wa2_src = a2[:out_dim]                             # (out_dim, 1)
    wa2_dst = a2[out_dim:]
    return (w1, wa1_src, wa1_dst, w2, wa2_src, wa2_dst)


def build_graph(key, n):
    """Dense adjacency adj[dst, src]=1.0 iff edge src->dst; self-loops + ring + random."""
    rand = (jax.random.uniform(key, (n, n)) < 0.35).astype(jnp.float32)
    ring = jnp.roll(jnp.eye(n, dtype=jnp.float32), 1, axis=0)   # edge i -> i+1
    return jnp.maximum(jnp.maximum(rand, ring), jnp.eye(n, dtype=jnp.float32))


def gat_reference(adj, h, params, *, num_heads, hidden_dim, out_dim):
    """Pure-JAX reference of the same dense-GAT math."""
    w1, wa1_src, wa1_dst, w2, wa2_src, wa2_dst = params

    def layer(x, w, wa_s, wa_d, heads, head_dim):
        z = x @ w
        s = z @ wa_s
        d = z @ wa_d
        outs = []
        for hd in range(heads):
            e = d[:, hd:hd + 1] + s[:, hd][None, :]
            e = jnp.where(e > 0, e, 0.01 * e)
            e = jnp.where(adj > 0, e, NEG_INF)
            p = jnp.exp(e - jnp.max(e, axis=1, keepdims=True)) * adj
            alpha = p / jnp.maximum(jnp.sum(p, axis=1, keepdims=True), 1e-30)
            outs.append(alpha @ z[:, hd * head_dim:(hd + 1) * head_dim])
        return jnp.concatenate(outs, axis=1)

    h1 = layer(h, w1, wa1_src, wa1_dst, num_heads, hidden_dim)
    h1 = jnp.where(h1 > 0, h1, jnp.exp(jnp.minimum(h1, 0.0)) - 1.0)
    return layer(h1, w2, wa2_src, wa2_dst, 1, out_dim)


if __name__ == "__main__":
    N, IN_DIM, HIDDEN_DIM, NUM_HEADS, OUT_DIM = 8, 16, 8, 4, 8

    key = jax.random.PRNGKey(0)
    k_graph, k_feat, k_params = jax.random.split(key, 3)

    adj = build_graph(k_graph, N)
    h = jax.random.normal(k_feat, (N, IN_DIM), jnp.float32)
    params = init_gat_params(k_params, IN_DIM, HIDDEN_DIM, OUT_DIM, NUM_HEADS)

    out = gat_forward(adj, h, params, num_heads=NUM_HEADS,
                      hidden_dim=HIDDEN_DIM, out_dim=OUT_DIM)
    jax.block_until_ready(out)

    ref = gat_reference(adj, h, params, num_heads=NUM_HEADS,
                        hidden_dim=HIDDEN_DIM, out_dim=OUT_DIM)
    assert out.shape == (N, OUT_DIM), out.shape
    assert bool(jnp.all(jnp.isfinite(out)))
    assert jnp.allclose(out, ref, atol=1e-3, rtol=1e-3), float(jnp.max(jnp.abs(out - ref)))

    print("KERNEL_OK")
</pallas_src>

<mosaic_0001>
module attributes {stable_mosaic.version = 11 : i64} {
  func.func @gat_kernel(%arg0: memref<8x8xf32, #tpu.memory_space<vmem>>, %arg1: memref<8x16xf32, #tpu.memory_space<vmem>>, %arg2: memref<16x32xf32, #tpu.memory_space<vmem>>, %arg3: memref<32x4xf32, #tpu.memory_space<vmem>>, %arg4: memref<32x4xf32, #tpu.memory_space<vmem>>, %arg5: memref<32x8xf32, #tpu.memory_space<vmem>>, %arg6: memref<8x1xf32, #tpu.memory_space<vmem>>, %arg7: memref<8x1xf32, #tpu.memory_space<vmem>>, %arg8: memref<8x8xf32, #tpu.memory_space<vmem>>) attributes {dimension_semantics = [], scalar_prefetch = 0 : i64, scratch_operands = 0 : i64, tpu.core_type = #tpu.core_type<tc>} {
    %c0 = arith.constant 0 : index
    %c0_0 = arith.constant 0 : index
    %0 = vector.load %arg0[%c0, %c0_0] : memref<8x8xf32, #tpu.memory_space<vmem>>, vector<8x8xf32>
    %cst = arith.constant 1.000000e+00 : f32
    %1 = vector.broadcast %cst : f32 to vector<8x1xf32>
    %c0_1 = arith.constant 0 : index
    %c0_2 = arith.constant 0 : index
    %2 = vector.load %arg1[%c0_1, %c0_2] : memref<8x16xf32, #tpu.memory_space<vmem>>, vector<8x16xf32>
    %c0_3 = arith.constant 0 : index
    %c0_4 = arith.constant 0 : index
    %3 = vector.load %arg2[%c0_3, %c0_4] : memref<16x32xf32, #tpu.memory_space<vmem>>, vector<16x32xf32>
    %c0_5 = arith.constant 0 : index
    %c0_6 = arith.constant 0 : index
    %4 = vector.load %arg3[%c0_5, %c0_6] : memref<32x4xf32, #tpu.memory_space<vmem>>, vector<32x4xf32>
    %c0_7 = arith.constant 0 : index
    %c0_8 = arith.constant 0 : index
    %5 = vector.load %arg4[%c0_7, %c0_8] : memref<32x4xf32, #tpu.memory_space<vmem>>, vector<32x4xf32>
    %cst_9 = arith.constant dense<0.000000e+00> : vector<8x32xf32>
    %6 = tpu.matmul %2, %3, %cst_9 {dimension_numbers = #tpu.dot_dimension_numbers<[1], [0], [0], [1], [0, 0, 1, 1], [], []>} : vector<8x16xf32>, vector<16x32xf32>, vector<8x32xf32> -> vector<8x32xf32>
    %cst_10 = arith.constant dense<0.000000e+00> : vector<8x4xf32>
    %7 = tpu.matmul %6, %4, %cst_10 {dimension_numbers = #tpu.dot_dimension_numbers<[1], [0], [0], [1], [0, 0, 1, 1], [], []>} : vector<8x32xf32>, vector<32x4xf32>, vector<8x4xf32> -> vector<8x4xf32>
    %cst_11 = arith.constant dense<0.000000e+00> : vector<8x4xf32>
    %8 = tpu.matmul %6, %5, %cst_11 {dimension_numbers = #tpu.dot_dimension_numbers<[1], [0], [0], [1], [0, 0, 1, 1], [], []>} : vector<8x32xf32>, vector<32x4xf32>, vector<8x4xf32> -> vector<8x4xf32>
    %9 = tpu.iota {dimensions = array<i32: 1>} : vector<1x32xi32>
    %cst_12 = arith.constant 0.000000e+00 : f32
    %10 = vector.broadcast %cst_12 : f32 to vector<8x32xf32>
    %11 = vector.extract_strided_slice %7 {offsets = [0, 0], sizes = [8, 1], strides = [1, 1]} : vector<8x4xf32> to vector<8x1xf32>
    %12 = vector.extract_strided_slice %8 {offsets = [0, 0], sizes = [8, 1], strides = [1, 1]} : vector<8x4xf32> to vector<8x1xf32>
    %cst_13 = arith.constant dense<0.000000e+00> : vector<8x8xf32>
    %13 = tpu.matmul %1, %11, %cst_13 {dimension_numbers = #tpu.dot_dimension_numbers<[1], [1], [0], [0], [0, 0, 1, 0], [], []>} : vector<8x1xf32>, vector<8x1xf32>, vector<8x8xf32> -> vector<8x8xf32>
    %14 = vector.broadcast %12 : vector<8x1xf32> to vector<8x8xf32>
    %15 = arith.addf %14, %13 : vector<8x8xf32>
    %cst_14 = arith.constant 0.000000e+00 : f32
    %16 = vector.broadcast %cst_14 : f32 to vector<8x8xf32>
    %17 = arith.cmpf ogt, %15, %16 : vector<8x8xf32>
    %cst_15 = arith.constant 0.00999999977 : f32
    %18 = vector.broadcast %cst_15 : f32 to vector<8x8xf32>
    %19 = arith.mulf %18, %15 : vector<8x8xf32>
    %20 = arith.select %17, %15, %19 : vector<8x8xi1>, vector<8x8xf32>
    %cst_16 = arith.constant 0.000000e+00 : f32
    %21 = vector.broadcast %cst_16 : f32 to vector<8x8xf32>
    %22 = arith.cmpf ogt, %0, %21 : vector<8x8xf32>
    %cst_17 = arith.constant -1.000000e+30 : f32
    %23 = vector.broadcast %cst_17 : f32 to vector<8x8xf32>
    %24 = arith.select %22, %20, %23 : vector<8x8xi1>, vector<8x8xf32>
    %cst_18 = arith.constant dense<0xFF800000> : vector<8xf32>
    %25 = vector.multi_reduction <maximumf>, %24, %cst_18 [1] : vector<8x8xf32> to vector<8xf32>
    %26 = vector.shape_cast %25 : vector<8xf32> to vector<8x1xf32>
    %27 = vector.broadcast %26 : vector<8x1xf32> to vector<8x8xf32>
    %28 = arith.subf %24, %27 : vector<8x8xf32>
    %29 = math.exp %28 : vector<8x8xf32>
    %30 = arith.mulf %29, %0 : vector<8x8xf32>
    %cst_19 = arith.constant dense<0.000000e+00> : vector<8xf32>
    %31 = vector.multi_reduction <add>, %30, %cst_19 [1] : vector<8x8xf32> to vector<8xf32>
    %32 = vector.shape_cast %31 : vector<8xf32> to vector<8x1xf32>
    %cst_20 = arith.constant 1.000000e-30 : f32
    %33 = vector.broadcast %cst_20 : f32 to vector<8x1xf32>
    %34 = arith.maximumf %32, %33 : vector<8x1xf32>
    %35 = vector.broadcast %34 : vector<8x1xf32> to vector<8x8xf32>
    %36 = arith.divf %30, %35 : vector<8x8xf32>
    %c0_i32 = arith.constant 0 : i32
    %37 = vector.broadcast %c0_i32 : i32 to vector<1x32xi32>
    %38 = arith.cmpi sge, %9, %37 : vector<1x32xi32>
    %c8_i32 = arith.constant 8 : i32
    %39 = vector.broadcast %c8_i32 : i32 to vector<1x32xi32>
    %40 = arith.cmpi slt, %9, %39 : vector<1x32xi32>
    %41 = arith.andi %38, %40 : vector<1x32xi1>
    %42 = arith.extui %41 : vector<1x32xi1> to vector<1x32xi32>
    %43 = arith.sitofp %42 : vector<1x32xi32> to vector<1x32xf32>
    %44 = vector.broadcast %43 : vector<1x32xf32> to vector<8x32xf32>
    %45 = arith.mulf %6, %44 : vector<8x32xf32>
    %cst_21 = arith.constant dense<0.000000e+00> : vector<8x32xf32>
    %46 = tpu.matmul %36, %45, %cst_21 {dimension_numbers = #tpu.dot_dimension_numbers<[1], [0], [0], [1], [0, 0, 1, 1], [], []>} : vector<8x8xf32>, vector<8x32xf32>, vector<8x32xf32> -> vector<8x32xf32>
    %47 = arith.addf %10, %46 : vector<8x32xf32>
    %48 = vector.extract_strided_slice %7 {offsets = [0, 1], sizes = [8, 1], strides = [1, 1]} : vector<8x4xf32> to vector<8x1xf32>
    %49 = vector.extract_strided_slice %8 {offsets = [0, 1], sizes = [8, 1], strides = [1, 1]} : vector<8x4xf32> to vector<8x1xf32>
    %cst_22 = arith.constant dense<0.000000e+00> : vector<8x8xf32>
    %50 = tpu.matmul %1, %48, %cst_22 {dimension_numbers = #tpu.dot_dimension_numbers<[1], [1], [0], [0], [0, 0, 1, 0], [], []>} : vector<8x1xf32>, vector<8x1xf32>, vector<8x8xf32> -> vector<8x8xf32>
    %51 = vector.broadcast %49 : vector<8x1xf32> to vector<8x8xf32>
    %52 = arith.addf %51, %50 : vector<8x8xf32>
    %cst_23 = arith.constant 0.000000e+00 : f32
    %53 = vector.broadcast %cst_23 : f32 to vector<8x8xf32>
    %54 = arith.cmpf ogt, %52, %53 : vector<8x8xf32>
    %cst_24 = arith.constant 0.00999999977 : f32
    %55 = vector.broadcast %cst_24 : f32 to vector<8x8xf32>
    %56 = arith.mulf %55, %52 : vector<8x8xf32>
    %57 = arith.select %54, %52, %56 : vector<8x8xi1>, vector<8x8xf32>
    %cst_25 = arith.constant 0.000000e+00 : f32
    %58 = vector.broadcast %cst_25 : f32 to vector<8x8xf32>
    %59 = arith.cmpf ogt, %0, %58 : vector<8x8xf32>
    %cst_26 = arith.constant -1.000000e+30 : f32
    %60 = vector.broadcast %cst_26 : f32 to vector<8x8xf32>
    %61 = arith.select %59, %57, %60 : vector<8x8xi1>, vector<8x8xf32>
    %cst_27 = arith.constant dense<0xFF800000> : vector<8xf32>
    %62 = vector.multi_reduction <maximumf>, %61, %cst_27 [1] : vector<8x8xf32> to vector<8xf32>
    %63 = vector.shape_cast %62 : vector<8xf32> to vector<8x1xf32>
    %64 = vector.broadcast %63 : vector<8x1xf32> to vector<8x8xf32>
    %65 = arith.subf %61, %64 : vector<8x8xf32>
    %66 = math.exp %65 : vector<8x8xf32>
    %67 = arith.mulf %66, %0 : vector<8x8xf32>
    %cst_28 = arith.constant dense<0.000000e+00> : vector<8xf32>
    %68 = vector.multi_reduction <add>, %67, %cst_28 [1] : vector<8x8xf32> to vector<8xf32>
    %69 = vector.shape_cast %68 : vector<8xf32> to vector<8x1xf32>
    %cst_29 = arith.constant 1.000000e-30 : f32
    %70 = vector.broadcast %cst_29 : f32 to vector<8x1xf32>
    %71 = arith.maximumf %69, %70 : vector<8x1xf32>
    %72 = vector.broadcast %71 : vector<8x1xf32> to vector<8x8xf32>
    %73 = arith.divf %67, %72 : vector<8x8xf32>
    %c8_i32_30 = arith.constant 8 : i32
    %74 = vector.broadcast %c8_i32_30 : i32 to vector<1x32xi32>
    %75 = arith.cmpi sge, %9, %74 : vector<1x32xi32>
    %c16_i32 = arith.constant 16 : i32
    %76 = vector.broadcast %c16_i32 : i32 to vector<1x32xi32>
    %77 = arith.cmpi slt, %9, %76 : vector<1x32xi32>
    %78 = arith.andi %75, %77 : vector<1x32xi1>
    %79 = arith.extui %78 : vector<1x32xi1> to vector<1x32xi32>
    %80 = arith.sitofp %79 : vector<1x32xi32> to vector<1x32xf32>
    %81 = vector.broadcast %80 : vector<1x32xf32> to vector<8x32xf32>
    %82 = arith.mulf %6, %81 : vector<8x32xf32>
    %cst_31 = arith.constant dense<0.000000e+00> : vector<8x32xf32>
    %83 = tpu.matmul %73, %82, %cst_31 {dimension_numbers = #tpu.dot_dimension_numbers<[1], [0], [0], [1], [0, 0, 1, 1], [], []>} : vector<8x8xf32>, vector<8x32xf32>, vector<8x32xf32> -> vector<8x32xf32>
    %84 = arith.addf %47, %83 : vector<8x32xf32>
    %85 = vector.extract_strided_slice %7 {offsets = [0, 2], sizes = [8, 1], strides = [1, 1]} : vector<8x4xf32> to vector<8x1xf32>
    %86 = vector.extract_strided_slice %8 {offsets = [0, 2], sizes = [8, 1], strides = [1, 1]} : vector<8x4xf32> to vector<8x1xf32>
    %cst_32 = arith.constant dense<0.000000e+00> : vector<8x8xf32>
    %87 = tpu.matmul %1, %85, %cst_32 {dimension_numbers = #tpu.dot_dimension_numbers<[1], [1], [0], [0], [0, 0, 1, 0], [], []>} : vector<8x1xf32>, vector<8x1xf32>, vector<8x8xf32> -> vector<8x8xf32>
    %88 = vector.broadcast %86 : vector<8x1xf32> to vector<8x8xf32>
    %89 = arith.addf %88, %87 : vector<8x8xf32>
    %cst_33 = arith.constant 0.000000e+00 : f32
    %90 = vector.broadcast %cst_33 : f32 to vector<8x8xf32>
    %91 = arith.cmpf ogt, %89, %90 : vector<8x8xf32>
    %cst_34 = arith.constant 0.00999999977 : f32
    %92 = vector.broadcast %cst_34 : f32 to vector<8x8xf32>
    %93 = arith.mulf %92, %89 : vector<8x8xf32>
    %94 = arith.select %91, %89, %93 : vector<8x8xi1>, vector<8x8xf32>
    %cst_35 = arith.constant 0.000000e+00 : f32
    %95 = vector.broadcast %cst_35 : f32 to vector<8x8xf32>
    %96 = arith.cmpf ogt, %0, %95 : vector<8x8xf32>
    %cst_36 = arith.constant -1.000000e+30 : f32
    %97 = vector.broadcast %cst_36 : f32 to vector<8x8xf32>
    %98 = arith.select %96, %94, %97 : vector<8x8xi1>, vector<8x8xf32>
    %cst_37 = arith.constant dense<0xFF800000> : vector<8xf32>
    %99 = vector.multi_reduction <maximumf>, %98, %cst_37 [1] : vector<8x8xf32> to vector<8xf32>
    %100 = vector.shape_cast %99 : vector<8xf32> to vector<8x1xf32>
    %101 = vector.broadcast %100 : vector<8x1xf32> to vector<8x8xf32>
    %102 = arith.subf %98, %101 : vector<8x8xf32>
    %103 = math.exp %102 : vector<8x8xf32>
    %104 = arith.mulf %103, %0 : vector<8x8xf32>
    %cst_38 = arith.constant dense<0.000000e+00> : vector<8xf32>
    %105 = vector.multi_reduction <add>, %104, %cst_38 [1] : vector<8x8xf32> to vector<8xf32>
    %106 = vector.shape_cast %105 : vector<8xf32> to vector<8x1xf32>
    %cst_39 = arith.constant 1.000000e-30 : f32
    %107 = vector.broadcast %cst_39 : f32 to vector<8x1xf32>
    %108 = arith.maximumf %106, %107 : vector<8x1xf32>
    %109 = vector.broadcast %108 : vector<8x1xf32> to vector<8x8xf32>
    %110 = arith.divf %104, %109 : vector<8x8xf32>
    %c16_i32_40 = arith.constant 16 : i32
    %111 = vector.broadcast %c16_i32_40 : i32 to vector<1x32xi32>
    %112 = arith.cmpi sge, %9, %111 : vector<1x32xi32>
    %c24_i32 = arith.constant 24 : i32
    %113 = vector.broadcast %c24_i32 : i32 to vector<1x32xi32>
    %114 = arith.cmpi slt, %9, %113 : vector<1x32xi32>
    %115 = arith.andi %112, %114 : vector<1x32xi1>
    %116 = arith.extui %115 : vector<1x32xi1> to vector<1x32xi32>
    %117 = arith.sitofp %116 : vector<1x32xi32> to vector<1x32xf32>
    %118 = vector.broadcast %117 : vector<1x32xf32> to vector<8x32xf32>
    %119 = arith.mulf %6, %118 : vector<8x32xf32>
    %cst_41 = arith.constant dense<0.000000e+00> : vector<8x32xf32>
    %120 = tpu.matmul %110, %119, %cst_41 {dimension_numbers = #tpu.dot_dimension_numbers<[1], [0], [0], [1], [0, 0, 1, 1], [], []>} : vector<8x8xf32>, vector<8x32xf32>, vector<8x32xf32> -> vector<8x32xf32>
    %121 = arith.addf %84, %120 : vector<8x32xf32>
    %122 = vector.extract_strided_slice %7 {offsets = [0, 3], sizes = [8, 1], strides = [1, 1]} : vector<8x4xf32> to vector<8x1xf32>
    %123 = vector.extract_strided_slice %8 {offsets = [0, 3], sizes = [8, 1], strides = [1, 1]} : vector<8x4xf32> to vector<8x1xf32>
    %cst_42 = arith.constant dense<0.000000e+00> : vector<8x8xf32>
    %124 = tpu.matmul %1, %122, %cst_42 {dimension_numbers = #tpu.dot_dimension_numbers<[1], [1], [0], [0], [0, 0, 1, 0], [], []>} : vector<8x1xf32>, vector<8x1xf32>, vector<8x8xf32> -> vector<8x8xf32>
    %125 = vector.broadcast %123 : vector<8x1xf32> to vector<8x8xf32>
    %126 = arith.addf %125, %124 : vector<8x8xf32>
    %cst_43 = arith.constant 0.000000e+00 : f32
    %127 = vector.broadcast %cst_43 : f32 to vector<8x8xf32>
    %128 = arith.cmpf ogt, %126, %127 : vector<8x8xf32>
    %cst_44 = arith.constant 0.00999999977 : f32
    %129 = vector.broadcast %cst_44 : f32 to vector<8x8xf32>
    %130 = arith.mulf %129, %126 : vector<8x8xf32>
    %131 = arith.select %128, %126, %130 : vector<8x8xi1>, vector<8x8xf32>
    %cst_45 = arith.constant 0.000000e+00 : f32
    %132 = vector.broadcast %cst_45 : f32 to vector<8x8xf32>
    %133 = arith.cmpf ogt, %0, %132 : vector<8x8xf32>
    %cst_46 = arith.constant -1.000000e+30 : f32
    %134 = vector.broadcast %cst_46 : f32 to vector<8x8xf32>
    %135 = arith.select %133, %131, %134 : vector<8x8xi1>, vector<8x8xf32>
    %cst_47 = arith.constant dense<0xFF800000> : vector<8xf32>
    %136 = vector.multi_reduction <maximumf>, %135, %cst_47 [1] : vector<8x8xf32> to vector<8xf32>
    %137 = vector.shape_cast %136 : vector<8xf32> to vector<8x1xf32>
    %138 = vector.broadcast %137 : vector<8x1xf32> to vector<8x8xf32>
    %139 = arith.subf %135, %138 : vector<8x8xf32>
    %140 = math.exp %139 : vector<8x8xf32>
    %141 = arith.mulf %140, %0 : vector<8x8xf32>
    %cst_48 = arith.constant dense<0.000000e+00> : vector<8xf32>
    %142 = vector.multi_reduction <add>, %141, %cst_48 [1] : vector<8x8xf32> to vector<8xf32>
    %143 = vector.shape_cast %142 : vector<8xf32> to vector<8x1xf32>
    %cst_49 = arith.constant 1.000000e-30 : f32
    %144 = vector.broadcast %cst_49 : f32 to vector<8x1xf32>
    %145 = arith.maximumf %143, %144 : vector<8x1xf32>
    %146 = vector.broadcast %145 : vector<8x1xf32> to vector<8x8xf32>
    %147 = arith.divf %141, %146 : vector<8x8xf32>
    %c24_i32_50 = arith.constant 24 : i32
    %148 = vector.broadcast %c24_i32_50 : i32 to vector<1x32xi32>
    %149 = arith.cmpi sge, %9, %148 : vector<1x32xi32>
    %c32_i32 = arith.constant 32 : i32
    %150 = vector.broadcast %c32_i32 : i32 to vector<1x32xi32>
    %151 = arith.cmpi slt, %9, %150 : vector<1x32xi32>
    %152 = arith.andi %149, %151 : vector<1x32xi1>
    %153 = arith.extui %152 : vector<1x32xi1> to vector<1x32xi32>
    %154 = arith.sitofp %153 : vector<1x32xi32> to vector<1x32xf32>
    %155 = vector.broadcast %154 : vector<1x32xf32> to vector<8x32xf32>
    %156 = arith.mulf %6, %155 : vector<8x32xf32>
    %cst_51 = arith.constant dense<0.000000e+00> : vector<8x32xf32>
    %157 = tpu.matmul %147, %156, %cst_51 {dimension_numbers = #tpu.dot_dimension_numbers<[1], [0], [0], [1], [0, 0, 1, 1], [], []>} : vector<8x8xf32>, vector<8x32xf32>, vector<8x32xf32> -> vector<8x32xf32>
    %158 = arith.addf %121, %157 : vector<8x32xf32>
    %cst_52 = arith.constant 0.000000e+00 : f32
    %159 = vector.broadcast %cst_52 : f32 to vector<8x32xf32>
    %160 = arith.cmpf ogt, %158, %159 : vector<8x32xf32>
    %cst_53 = arith.constant 0.000000e+00 : f32
    %161 = vector.broadcast %cst_53 : f32 to vector<8x32xf32>
    %162 = arith.minimumf %158, %161 : vector<8x32xf32>
    %163 = math.exp %162 : vector<8x32xf32>
    %cst_54 = arith.constant 1.000000e+00 : f32
    %164 = vector.broadcast %cst_54 : f32 to vector<8x32xf32>
    %165 = arith.subf %163, %164 : vector<8x32xf32>
    %166 = arith.select %160, %158, %165 : vector<8x32xi1>, vector<8x32xf32>
    %c0_55 = arith.constant 0 : index
    %c0_56 = arith.constant 0 : index
    %167 = vector.load %arg5[%c0_55, %c0_56] : memref<32x8xf32, #tpu.memory_space<vmem>>, vector<32x8xf32>
    %c0_57 = arith.constant 0 : index
    %c0_58 = arith.constant 0 : index
    %168 = vector.load %arg6[%c0_57, %c0_58] : memref<8x1xf32, #tpu.memory_space<vmem>>, vector<8x1xf32>
    %c0_59 = arith.constant 0 : index
    %c0_60 = arith.constant 0 : index
    %169 = vector.load %arg7[%c0_59, %c0_60] : memref<8x1xf32, #tpu.memory_space<vmem>>, vector<8x1xf32>
    %cst_61 = arith.constant dense<0.000000e+00> : vector<8x8xf32>
    %170 = tpu.matmul %166, %167, %cst_61 {dimension_numbers = #tpu.dot_dimension_numbers<[1], [0], [0], [1], [0, 0, 1, 1], [], []>} : vector<8x32xf32>, vector<32x8xf32>, vector<8x8xf32> -> vector<8x8xf32>
    %cst_62 = arith.constant dense<0.000000e+00> : vector<8x1xf32>
    %171 = tpu.matmul %170, %168, %cst_62 {dimension_numbers = #tpu.dot_dimension_numbers<[1], [0], [0], [1], [0, 0, 1, 1], [], []>} : vector<8x8xf32>, vector<8x1xf32>, vector<8x1xf32> -> vector<8x1xf32>
    %cst_63 = arith.constant dense<0.000000e+00> : vector<8x1xf32>
    %172 = tpu.matmul %170, %169, %cst_63 {dimension_numbers = #tpu.dot_dimension_numbers<[1], [0], [0], [1], [0, 0, 1, 1], [], []>} : vector<8x8xf32>, vector<8x1xf32>, vector<8x1xf32> -> vector<8x1xf32>
    %cst_64 = arith.constant 0.000000e+00 : f32
    %173 = vector.broadcast %cst_64 : f32 to vector<8x8xf32>
    %cst_65 = arith.constant dense<0.000000e+00> : vector<8x8xf32>
    %174 = tpu.matmul %1, %171, %cst_65 {dimension_numbers = #tpu.dot_dimension_numbers<[1], [1], [0], [0], [0, 0, 1, 0], [], []>} : vector<8x1xf32>, vector<8x1xf32>, vector<8x8xf32> -> vector<8x8xf32>
    %175 = vector.broadcast %172 : vector<8x1xf32> to vector<8x8xf32>
    %176 = arith.addf %175, %174 : vector<8x8xf32>
    %cst_66 = arith.constant 0.000000e+00 : f32
    %177 = vector.broadcast %cst_66 : f32 to vector<8x8xf32>
    %178 = arith.cmpf ogt, %176, %177 : vector<8x8xf32>
    %cst_67 = arith.constant 0.00999999977 : f32
    %179 = vector.broadcast %cst_67 : f32 to vector<8x8xf32>
    %180 = arith.mulf %179, %176 : vector<8x8xf32>
    %181 = arith.select %178, %176, %180 : vector<8x8xi1>, vector<8x8xf32>
    %cst_68 = arith.constant 0.000000e+00 : f32
    %182 = vector.broadcast %cst_68 : f32 to vector<8x8xf32>
    %183 = arith.cmpf ogt, %0, %182 : vector<8x8xf32>
    %cst_69 = arith.constant -1.000000e+30 : f32
    %184 = vector.broadcast %cst_69 : f32 to vector<8x8xf32>
    %185 = arith.select %183, %181, %184 : vector<8x8xi1>, vector<8x8xf32>
    %cst_70 = arith.constant dense<0xFF800000> : vector<8xf32>
    %186 = vector.multi_reduction <maximumf>, %185, %cst_70 [1] : vector<8x8xf32> to vector<8xf32>
    %187 = vector.shape_cast %186 : vector<8xf32> to vector<8x1xf32>
    %188 = vector.broadcast %187 : vector<8x1xf32> to vector<8x8xf32>
    %189 = arith.subf %185, %188 : vector<8x8xf32>
    %190 = math.exp %189 : vector<8x8xf32>
    %191 = arith.mulf %190, %0 : vector<8x8xf32>
    %cst_71 = arith.constant dense<0.000000e+00> : vector<8xf32>
    %192 = vector.multi_reduction <add>, %191, %cst_71 [1] : vector<8x8xf32> to vector<8xf32>
    %193 = vector.shape_cast %192 : vector<8xf32> to vector<8x1xf32>
    %cst_72 = arith.constant 1.000000e-30 : f32
    %194 = vector.broadcast %cst_72 : f32 to vector<8x1xf32>
    %195 = arith.maximumf %193, %194 : vector<8x1xf32>
    %196 = vector.broadcast %195 : vector<8x1xf32> to vector<8x8xf32>
    %197 = arith.divf %191, %196 : vector<8x8xf32>
    %cst_73 = arith.constant dense<0.000000e+00> : vector<8x8xf32>
    %198 = tpu.matmul %197, %170, %cst_73 {dimension_numbers = #tpu.dot_dimension_numbers<[1], [0], [0], [1], [0, 0, 1, 1], [], []>} : vector<8x8xf32>, vector<8x8xf32>, vector<8x8xf32> -> vector<8x8xf32>
    %199 = arith.addf %173, %198 : vector<8x8xf32>
    %c0_74 = arith.constant 0 : index
    %c0_75 = arith.constant 0 : index
    %200 = vector.load %arg8[%c0_74, %c0_75] : memref<8x8xf32, #tpu.memory_space<vmem>>, vector<8x8xf32>
    tpu.vector_store %arg8[%c0_74, %c0_75], %199 {strides = array<i32>} : memref<8x8xf32, #tpu.memory_space<vmem>>, vector<8x8xf32>,
    return
  }
}

</mosaic_0001>

<llo_original>
// kernel: tpu_custom_call.1
$region0: #{tpu_custom_call.1}
  #allocation0 [shape = 'u32[]', space=smem, size = 0x4, offset = 0x4, fixed_abs, tag = 'smem constant byte address 0x4 - core index']
  #allocation1 [shape = 'u32[144,128]{1,0:T(1,128)}', space=vmem, size = 0x12000, scoped, tag = 'internal scratch']
  %s0 = inlined_call_operand.vmem [shape: f32[8,8], index: 0, kind: input, shape index: {}]
  %s1 = inlined_call_operand.vmem [shape: f32[8,16], index: 1, kind: input, shape index: {}]
  %s2 = inlined_call_operand.vmem [shape: f32[16,32], index: 2, kind: input, shape index: {}]
  %s3 = inlined_call_operand.vmem [shape: f32[32,4], index: 3, kind: input, shape index: {}]
  %s4 = inlined_call_operand.vmem [shape: f32[32,4], index: 4, kind: input, shape index: {}]
  %s5 = inlined_call_operand.vmem [shape: f32[32,8], index: 5, kind: input, shape index: {}]
  %s6 = inlined_call_operand.vmem [shape: f32[8,1], index: 6, kind: input, shape index: {}]
  %s7 = inlined_call_operand.vmem [shape: f32[8,1], index: 7, kind: input, shape index: {}]
  %s8 = inlined_call_operand.hbm [shape: f32[8,8], index: 8, kind: output, shape index: {}]
  %s9 = sld [smem:[#allocation0]]
  $region42: #{tpu_custom_call.1} parent=0
    _
  %s11 = ssub.s32 1, %s9
  %s12 = scalar_select 0, %s11, %s9
  $region1: #{tpu_custom_call.1} parent=0
    #allocation2 [shape = 'u8[4096]{0}', space=vmem, size = 0x1000, scoped, tag = 'output window, operand 0, single buffered']
    #allocation3 [shape = 's32[1]{0}', space=sflag, size = 0x4, scoped, tag = 'scoped memory for tpu_custom_call.1']
    %13 = vsyncpa [#allocation3], 0
    // Predicated region
    $region2: #{tpu_custom_call.1} parent=1 // pred_check
      _
    $region3: #{tpu_custom_call.1} parent=1 // pred_check_branch
      %15 = sbr.rel (0) target = $region5
    $region4: #{tpu_custom_call.1} parent=1 // pred_region
      _
    $region5: #{tpu_custom_call.1} parent=1 // pred_fallthru
      _
    // Predicated region
    $region6: #{tpu_custom_call.1} parent=1 // pred_check
      _
    $region7: #{tpu_custom_call.1} parent=1 // pred_check_branch
      %17 = sbr.rel (0) target = $region9
    $region8: #{tpu_custom_call.1} parent=1 // pred_region
      _
    $region9: #{tpu_custom_call.1} parent=1 // pred_fallthru
      _
    // Predicated region
    $region10: #{tpu_custom_call.1} parent=1 // pred_check
      _
    $region11: #{tpu_custom_call.1} parent=1 // pred_check_branch
      %19 = sbr.rel (0) target = $region13
    $region12: #{tpu_custom_call.1} parent=1 // pred_region
      _
    $region13: #{tpu_custom_call.1} parent=1 // pred_fallthru
      _
    // Predicated region
    $region14: #{tpu_custom_call.1} parent=1 // pred_check
      _
    $region15: #{tpu_custom_call.1} parent=1 // pred_check_branch
      %21 = sbr.rel (0) target = $region17
    $region16: #{tpu_custom_call.1} parent=1 // pred_region
      _
    $region17: #{tpu_custom_call.1} parent=1 // pred_fallthru
      _
    // Predicated region
    $region18: #{tpu_custom_call.1} parent=1 // pred_check
      _
    $region19: #{tpu_custom_call.1} parent=1 // pred_check_branch
      %23 = sbr.rel (0) target = $region21
    $region20: #{tpu_custom_call.1} parent=1 // pred_region
      _
    $region21: #{tpu_custom_call.1} parent=1 // pred_fallthru
      _
    // Predicated region
    $region22: #{tpu_custom_call.1} parent=1 // pred_check
      _
    $region23: #{tpu_custom_call.1} parent=1 // pred_check_branch
      %25 = sbr.rel (0) target = $region25
    $region24: #{tpu_custom_call.1} parent=1 // pred_region
      _
    $region25: #{tpu_custom_call.1} parent=1 // pred_fallthru
      _
    // Predicated region
    $region26: #{tpu_custom_call.1} parent=1 // pred_check
      _
    $region27: #{tpu_custom_call.1} parent=1 // pred_check_branch
      %27 = sbr.rel (0) target = $region29
    $region28: #{tpu_custom_call.1} parent=1 // pred_region
      _
    $region29: #{tpu_custom_call.1} parent=1 // pred_fallthru
      _
    // Predicated region
    $region30: #{tpu_custom_call.1} parent=1 // pred_check
      _
    $region31: #{tpu_custom_call.1} parent=1 // pred_check_branch
      %29 = sbr.rel (0) target = $region33
    $region32: #{tpu_custom_call.1} parent=1 // pred_region
      _
    $region33: #{tpu_custom_call.1} parent=1 // pred_fallthru
      _
    %v30 = vld [vmem:[%s0] sm:$0xff]
    %v31 = vld [vmem:[%s1] sm:$0xff]
    %v32 = vld [vmem:[%s2] sm:$0xff]
    %v33 = vld [vmem:[%s2 + $0x8] sm:$0xff]
    %v34 = vld [vmem:[%s3] sm:$0xff]
    %v35 = vld [vmem:[%s3 + $0x8] sm:$0xff]
    %v36 = vld [vmem:[%s3 + $0x10] sm:$0xff]
    %v37 = vld [vmem:[%s3 + $0x18] sm:$0xff]
    %v38 = vld [vmem:[%s4] sm:$0xff]
    %v39 = vld [vmem:[%s4 + $0x8] sm:$0xff]
    %v40 = vld [vmem:[%s4 + $0x10] sm:$0xff]
    %v41 = vld [vmem:[%s4 + $0x18] sm:$0xff]
    %vm42 = vcmask 130048
    %v44 = vsel %vm42, %v31, 0
    %46 = vmatprep.subr.mxu0 0.0
    %47 = vmatpush1.msra.mxu0 %v32
    %48 = vmatprep.subr.mxu0 0.0
    %49 = vmatpush1.msra.mxu0 %v33
    %50 = vmatprep.subr.mxu0 0.0
    %51 = vmatpush1.msra.mxu0 0.0
    %52 = vmatprep.subr.mxu0 0.0
    %53 = vmatpush1.msra.mxu0 0.0
    %54 = vmatprep.subr.mxu0 0.0
    %55 = vmatpush1.msra.mxu0 0.0
    %56 = vmatprep.subr.mxu0 0.0
    %57 = vmatpush1.msra.mxu0 0.0
    %58 = vmatprep.subr.mxu0 0.0
    %59 = vmatpush1.msra.mxu0 0.0
    %60 = vmatprep.subr.mxu0 0.0
    %61 = vmatpush1.msra.mxu0 0.0
    %62 = vmatprep.subr.mxu0 0.0
    %63 = vmatpush1.msra.mxu0 0.0
    %64 = vmatprep.subr.mxu0 0.0
    %65 = vmatpush1.msra.mxu0 0.0
    %66 = vmatprep.subr.mxu0 0.0
    %67 = vmatpush1.msra.mxu0 0.0
    %68 = vmatprep.subr.mxu0 0.0
    %69 = vmatpush1.msra.mxu0 0.0
    %70 = vmatprep.subr.mxu0 0.0
    %71 = vmatpush1.msra.mxu0 0.0
    %72 = vmatprep.subr.mxu0 0.0
    %73 = vmatpush1.msra.mxu0 0.0
    %74 = vmatprep.subr.mxu0 0.0
    %75 = vmatpush1.msra.mxu0 0.0
    %76 = vmatprep.subr.mxu0 0.0
    %77 = vmatpush1.msra.mxu0 0.0
    %78 = vmatprep.subr.mxu0 0.0
    %79 = vmatpush1.msra.mxu0 0.0
    %80 = vmatprep.subr.mxu0 0.0
    %81 = vmatpush1.msra.mxu0 0.0
    %82 = vmatprep.subr.mxu0 0.0
    %83 = vmatpush1.msra.mxu0 0.0
    %84 = vmatprep.subr.mxu0 0.0
    %85 = vmatpush1.msra.mxu0 0.0
    %86 = vmatprep.subr.mxu0 0.0
    %87 = vmatpush1.msra.mxu0 0.0
    %88 = vmatprep.subr.mxu0 0.0
    %89 = vmatpush1.msra.mxu0 0.0
    %90 = vmatprep.subr.mxu0 0.0
    %91 = vmatpush1.msra.mxu0 0.0
    %92 = vmatprep.subr.mxu0 0.0
    %93 = vmatpush1.msra.mxu0 0.0
    %94 = vmatprep.subr.mxu0 0.0
    %95 = vmatpush1.msra.mxu0 0.0
    %96 = vmatprep.subr.mxu0 0.0
    %97 = vmatpush1.msra.mxu0 0.0
    %98 = vmatprep.subr.mxu0 0.0
    %99 = vmatpush1.msra.mxu0 0.0
    %100 = vmatprep.subr.mxu0 0.0
    %101 = vmatpush1.msra.mxu0 0.0
    %102 = vmatprep.subr.mxu0 0.0
    %103 = vmatpush1.msra.mxu0 0.0
    %104 = vmatprep.subr.mxu0 0.0
    %105 = vmatpush1.msra.mxu0 0.0
    %106 = vmatprep.subr.mxu0 0.0
    %107 = vmatpush1.msra.mxu0 0.0
    %108 = vmatprep.subr.mxu0 0.0
    %109 = vmatpush1.msra.mxu0 0.0
    %110 = vmatprep.mubr.f32.mxu0 0.0
    %111 = vmatmul.mubr.f32.gmra.mrb[0].mxu0 %v44
    %v112 = vpop.f32.mrb[0].mxu0
    %v113 = vadd.f32 0.0, %v112
    %v114 = vpop.f32.mrb[0].mxu0
    %115 = vdwg.mxu0
    %vm116 = vcmask 261120
    %v118 = vsel %vm116, %v113, 0
    %120 = vmatprep.subr.mxu0 0.0
    %121 = vmatpush1.msra.mxu0 %v34
    %122 = vmatprep.subr.mxu0 0.0
    %123 = vmatpush1.msra.mxu0 %v35
    %124 = vmatprep.subr.mxu0 0.0
    %125 = vmatpush1.msra.mxu0 %v36
    %126 = vmatprep.subr.mxu0 0.0
    %127 = vmatpush1.msra.mxu0 %v37
    %128 = vmatprep.subr.mxu0 0.0
    %129 = vmatpush1.msra.mxu0 0.0
    %130 = vmatprep.subr.mxu0 0.0
    %131 = vmatpush1.msra.mxu0 0.0
    %132 = vmatprep.subr.mxu0 0.0
    %133 = vmatpush1.msra.mxu0 0.0
    %134 = vmatprep.subr.mxu0 0.0
    %135 = vmatpush1.msra.mxu0 0.0
    %136 = vmatprep.subr.mxu0 0.0
    %137 = vmatpush1.msra.mxu0 0.0
    %138 = vmatprep.subr.mxu0 0.0
    %139 = vmatpush1.msra.mxu0 0.0
    %140 = vmatprep.subr.mxu0 0.0
    %141 = vmatpush1.msra.mxu0 0.0
    %142 = vmatprep.subr.mxu0 0.0
    %143 = vmatpush1.msra.mxu0 0.0
    %144 = vmatprep.subr.mxu0 0.0
    %145 = vmatpush1.msra.mxu0 0.0
    %146 = vmatprep.subr.mxu0 0.0
    %147 = vmatpush1.msra.mxu0 0.0
    %148 = vmatprep.subr.mxu0 0.0
    %149 = vmatpush1.msra.mxu0 0.0
    %150 = vmatprep.subr.mxu0 0.0
    %151 = vmatpush1.msra.mxu0 0.0
    %152 = vmatprep.subr.mxu0 0.0
    %153 = vmatpush1.msra.mxu0 0.0
    %154 = vmatprep.subr.mxu0 0.0
    %155 = vmatpush1.msra.mxu0 0.0
    %156 = vmatprep.subr.mxu0 0.0
    %157 = vmatpush1.msra.mxu0 0.0
    %158 = vmatprep.subr.mxu0 0.0
    %159 = vmatpush1.msra.mxu0 0.0
    %160 = vmatprep.subr.mxu0 0.0
    %161 = vmatpush1.msra.mxu0 0.0
    %162 = vmatprep.subr.mxu0 0.0
    %163 = vmatpush1.msra.mxu0 0.0
    %164 = vmatprep.subr.mxu0 0.0
    %165 = vmatpush1.msra.mxu0 0.0
    %166 = vmatprep.subr.mxu0 0.0
    %167 = vmatpush1.msra.mxu0 0.0
    %168 = vmatprep.subr.mxu0 0.0
    %169 = vmatpush1.msra.mxu0 0.0
    %170 = vmatprep.subr.mxu0 0.0
    %171 = vmatpush1.msra.mxu0 0.0
    %172 = vmatprep.subr.mxu0 0.0
    %173 = vmatpush1.msra.mxu0 0.0
    %174 = vmatprep.subr.mxu0 0.0
    %175 = vmatpush1.msra.mxu0 0.0
    %176 = vmatprep.subr.mxu0 0.0
    %177 = vmatpush1.msra.mxu0 0.0
    %178 = vmatprep.subr.mxu0 0.0
    %179 = vmatpush1.msra.mxu0 0.0
    %180 = vmatprep.subr.mxu0 0.0
    %181 = vmatpush1.msra.mxu0 0.0
    %182 = vmatprep.subr.mxu0 0.0
    %183 = vmatpush1.msra.mxu0 0.0
    %184 = vmatprep.mubr.f32.mxu0 0.0
    %185 = vmatmul.mubr.f32.gmra.mrb[0].mxu0 %v118
    %v186 = vpop.f32.mrb[0].mxu0
    %v187 = vadd.f32 0.0, %v186
    %v188 = vpop.f32.mrb[0].mxu0
    %189 = vdwg.mxu0
    %190 = vmatprep.subr.mxu0 0.0
    %191 = vmatpush1.msra.mxu0 %v38
    %192 = vmatprep.subr.mxu0 0.0
    %193 = vmatpush1.msra.mxu0 %v39
    %194 = vmatprep.subr.mxu0 0.0
    %195 = vmatpush1.msra.mxu0 %v40
    %196 = vmatprep.subr.mxu0 0.0
    %197 = vmatpush1.msra.mxu0 %v41
    %198 = vmatprep.subr.mxu0 0.0
    %199 = vmatpush1.msra.mxu0 0.0
    %200 = vmatprep.subr.mxu0 0.0
    %201 = vmatpush1.msra.mxu0 0.0
    %202 = vmatprep.subr.mxu0 0.0
    %203 = vmatpush1.msra.mxu0 0.0
    %204 = vmatprep.subr.mxu0 0.0
    %205 = vmatpush1.msra.mxu0 0.0
    %206 = vmatprep.subr.mxu0 0.0
    %207 = vmatpush1.msra.mxu0 0.0
    %208 = vmatprep.subr.mxu0 0.0
    %209 = vmatpush1.msra.mxu0 0.0
    %210 = vmatprep.subr.mxu0 0.0
    %211 = vmatpush1.msra.mxu0 0.0
    %212 = vmatprep.subr.mxu0 0.0
    %213 = vmatpush1.msra.mxu0 0.0
    %214 = vmatprep.subr.mxu0 0.0
    %215 = vmatpush1.msra.mxu0 0.0
    %216 = vmatprep.subr.mxu0 0.0
    %217 = vmatpush1.msra.mxu0 0.0
    %218 = vmatprep.subr.mxu0 0.0
    %219 = vmatpush1.msra.mxu0 0.0
    %220 = vmatprep.subr.mxu0 0.0
    %221 = vmatpush1.msra.mxu0 0.0
    %222 = vmatprep.subr.mxu0 0.0
    %223 = vmatpush1.msra.mxu0 0.0
    %224 = vmatprep.subr.mxu0 0.0
    %225 = vmatpush1.msra.mxu0 0.0
    %226 = vmatprep.subr.mxu0 0.0
    %227 = vmatpush1.msra.mxu0 0.0
    %228 = vmatprep.subr.mxu0 0.0
    %229 = vmatpush1.msra.mxu0 0.0
    %230 = vmatprep.subr.mxu0 0.0
    %231 = vmatpush1.msra.mxu0 0.0
    %232 = vmatprep.subr.mxu0 0.0
    %233 = vmatpush1.msra.mxu0 0.0
    %234 = vmatprep.subr.mxu0 0.0
    %235 = vmatpush1.msra.mxu0 0.0
    %236 = vmatprep.subr.mxu0 0.0
    %237 = vmatpush1.msra.mxu0 0.0
    %238 = vmatprep.subr.mxu0 0.0
    %239 = vmatpush1.msra.mxu0 0.0
    %240 = vmatprep.subr.mxu0 0.0
    %241 = vmatpush1.msra.mxu0 0.0
    %242 = vmatprep.subr.mxu0 0.0
    %243 = vmatpush1.msra.mxu0 0.0
    %244 = vmatprep.subr.mxu0 0.0
    %245 = vmatpush1.msra.mxu0 0.0
    %246 = vmatprep.subr.mxu0 0.0
    %247 = vmatpush1.msra.mxu0 0.0
    %248 = vmatprep.subr.mxu0 0.0
    %249 = vmatpush1.msra.mxu0 0.0
    %250 = vmatprep.subr.mxu0 0.0
    %251 = vmatpush1.msra.mxu0 0.0
    %252 = vmatprep.subr.mxu0 0.0
    %253 = vmatpush1.msra.mxu0 0.0
    %254 = vmatprep.mubr.f32.mxu0 0.0
    %255 = vmatmul.mubr.f32.gmra.mrb[0].mxu0 %v118
    %v256 = vpop.f32.mrb[0].mxu0
    %v257 = vadd.f32 0.0, %v256
    %v258 = vpop.f32.mrb[0].mxu0
    %259 = vdwg.mxu0
    %v260 = vlaneseq
    %v261 = vand.u32 %v260, 127
    %vm262 = vcmask 7168
    %v264 = vsel %vm262, 1.0, 0
    %v267 = vsel %vm262, %v187, 0
    %269 = vmatprep.subr.mxu0 0.0
    %270 = vmatpush1.xpose.msra.mxu0 %v267
    %271 = vmatprep.subr.mxu0 0.0
    %272 = vmatpush1.xpose.msra.mxu0 0.0
    %273 = vmatprep.subr.mxu0 0.0
    %274 = vmatpush1.xpose.msra.mxu0 0.0
    %275 = vmatprep.subr.mxu0 0.0
    %276 = vmatpush1.xpose.msra.mxu0 0.0
    %277 = vmatprep.subr.mxu0 0.0
    %278 = vmatpush1.xpose.msra.mxu0 0.0
    %279 = vmatprep.subr.mxu0 0.0
    %280 = vmatpush1.xpose.msra.mxu0 0.0
    %281 = vmatprep.subr.mxu0 0.0
    %282 = vmatpush1.xpose.msra.mxu0 0.0
    %283 = vmatprep.subr.mxu0 0.0
    %284 = vmatpush1.xpose.msra.mxu0 0.0
    %285 = vmatprep.subr.mxu0 0.0
    %286 = vmatpush1.xpose.msra.mxu0 0.0
    %287 = vmatprep.subr.mxu0 0.0
    %288 = vmatpush1.xpose.msra.mxu0 0.0
    %289 = vmatprep.subr.mxu0 0.0
    %290 = vmatpush1.xpose.msra.mxu0 0.0
    %291 = vmatprep.subr.mxu0 0.0
    %292 = vmatpush1.xpose.msra.mxu0 0.0
    %293 = vmatprep.subr.mxu0 0.0
    %294 = vmatpush1.xpose.msra.mxu0 0.0
    %295 = vmatprep.subr.mxu0 0.0
    %296 = vmatpush1.xpose.msra.mxu0 0.0
    %297 = vmatprep.subr.mxu0 0.0
    %298 = vmatpush1.xpose.msra.mxu0 0.0
    %299 = vmatprep.subr.mxu0 0.0
    %300 = vmatpush1.xpose.msra.mxu0 0.0
    %301 = vmatprep.subr.mxu0 0.0
    %302 = vmatpush1.xpose.msra.mxu0 0.0
    %303 = vmatprep.subr.mxu0 0.0
    %304 = vmatpush1.xpose.msra.mxu0 0.0
    %305 = vmatprep.subr.mxu0 0.0
    %306 = vmatpush1.xpose.msra.mxu0 0.0
    %307 = vmatprep.subr.mxu0 0.0
    %308 = vmatpush1.xpose.msra.mxu0 0.0
    %309 = vmatprep.subr.mxu0 0.0
    %310 = vmatpush1.xpose.msra.mxu0 0.0
    %311 = vmatprep.subr.mxu0 0.0
    %312 = vmatpush1.xpose.msra.mxu0 0.0
    %313 = vmatprep.subr.mxu0 0.0
    %314 = vmatpush1.xpose.msra.mxu0 0.0
    %315 = vmatprep.subr.mxu0 0.0
    %316 = vmatpush1.xpose.msra.mxu0 0.0
    %317 = vmatprep.subr.mxu0 0.0
    %318 = vmatpush1.xpose.msra.mxu0 0.0
    %319 = vmatprep.subr.mxu0 0.0
    %320 = vmatpush1.xpose.msra.mxu0 0.0
    %321 = vmatprep.subr.mxu0 0.0
    %322 = vmatpush1.xpose.msra.mxu0 0.0
    %323 = vmatprep.subr.mxu0 0.0
    %324 = vmatpush1.xpose.msra.mxu0 0.0
    %325 = vmatprep.subr.mxu0 0.0
    %326 = vmatpush1.xpose.msra.mxu0 0.0
    %327 = vmatprep.subr.mxu0 0.0
    %328 = vmatpush1.xpose.msra.mxu0 0.0
    %329 = vmatprep.subr.mxu0 0.0
    %330 = vmatpush1.xpose.msra.mxu0 0.0
    %331 = vmatprep.subr.mxu0 0.0
    %332 = vmatpush1.xpose.msra.mxu0 0.0
    %333 = vmatprep.mubr.f32.mxu0 0.0
    %334 = vmatmul.mubr.f32.gmra.mrb[0].mxu0 %v264
    %v335 = vpop.f32.mrb[0].mxu0
    %v336 = vadd.f32 0.0, %v335
    %v337 = vpop.f32.mrb[0].mxu0
    %338 = vdwg.mxu0
    %340 = vset.pattern.permute.xlu0 0
    %341 = vperm.xlu0 %340, %v257
    %v342 = vpop.permute.xlu0 %341
    %v344 = vadd.f32 %v342, %v336
    %vm345 = vcmp.gt.f32.partialorder %v344, 0.0
    %v346 = vmul.f32 %v344, 0.01
    %v347 = vsel %vm345, %v344, %v346
    %vm348 = vcmp.gt.f32.partialorder %v30, 0.0
    %v349 = vsel %vm348, %v347, -1e+30
    %vm350 = vcmask 64512
    %v351 = vsel %vm350, %v349, -inf
    %352 = vmax.xlane.f32.xlu0 %v351
    %v353 = vpop.xlane.xlu0 %352
    %v354 = vsub.f32 %v349, %v353
    %v355 = vmul.f32 %v354, 1.442695
    %v356 = vpow.pop %v355
    %v357 = vmul.f32 %v356, %v30
    %v358 = vsel %vm350, %v357, 0.0
    %359 = vadd.xlane.f32.xlu0 %v358
    %v360 = vpop.xlane.xlu0 %359
    %v361 = vmax.f32 %v360, 1e-30
    %v362 = vrcp.pop %v361
    %v363 = vmul.f32 %v357, %v362
    %vm364 = vcmp.ge.s32.totalorder %v261, 0
    %vm365 = vcmp.lt.s32.totalorder %v261, 8
    %vm366 = vmand %vm364, %vm365
    %v367 = vsel %vm366, 1, 0
    %v368 = vcvt.s32.f32 %v367
    %v369 = vmul.f32 %v113, %v368
    %370 = vrot.lane.b32.xlu0 %v187, 127
    %v371 = vpop.permute.xlu0 %370
    %v372 = vsel %vm262, %v371, 0
    %374 = vmatprep.subr.mxu0 0.0
    %375 = vmatpush1.xpose.msra.mxu0 %v372
    %376 = vmatprep.subr.mxu0 0.0
    %377 = vmatpush1.xpose.msra.mxu0 0.0
    %378 = vmatprep.subr.mxu0 0.0
    %379 = vmatpush1.xpose.msra.mxu0 0.0
    %380 = vmatprep.subr.mxu0 0.0
    %381 = vmatpush1.xpose.msra.mxu0 0.0
    %382 = vmatprep.subr.mxu0 0.0
    %383 = vmatpush1.xpose.msra.mxu0 0.0
    %384 = vmatprep.subr.mxu0 0.0
    %385 = vmatpush1.xpose.msra.mxu0 0.0
    %386 = vmatprep.subr.mxu0 0.0
    %387 = vmatpush1.xpose.msra.mxu0 0.0
    %388 = vmatprep.subr.mxu0 0.0
    %389 = vmatpush1.xpose.msra.mxu0 0.0
    %390 = vmatprep.subr.mxu0 0.0
    %391 = vmatpush1.xpose.msra.mxu0 0.0
    %392 = vmatprep.subr.mxu0 0.0
    %393 = vmatpush1.xpose.msra.mxu0 0.0
    %394 = vmatprep.subr.mxu0 0.0
    %395 = vmatpush1.xpose.msra.mxu0 0.0
    %396 = vmatprep.subr.mxu0 0.0
    %397 = vmatpush1.xpose.msra.mxu0 0.0
    %398 = vmatprep.subr.mxu0 0.0
    %399 = vmatpush1.xpose.msra.mxu0 0.0
    %400 = vmatprep.subr.mxu0 0.0
    %401 = vmatpush1.xpose.msra.mxu0 0.0
    %402 = vmatprep.subr.mxu0 0.0
    %403 = vmatpush1.xpose.msra.mxu0 0.0
    %404 = vmatprep.subr.mxu0 0.0
    %405 = vmatpush1.xpose.msra.mxu0 0.0
    %406 = vmatprep.subr.mxu0 0.0
    %407 = vmatpush1.xpose.msra.mxu0 0.0
    %408 = vmatprep.subr.mxu0 0.0
    %409 = vmatpush1.xpose.msra.mxu0 0.0
    %410 = vmatprep.subr.mxu0 0.0
    %411 = vmatpush1.xpose.msra.mxu0 0.0
    %412 = vmatprep.subr.mxu0 0.0
    %413 = vmatpush1.xpose.msra.mxu0 0.0
    %414 = vmatprep.subr.mxu0 0.0
    %415 = vmatpush1.xpose.msra.mxu0 0.0
    %416 = vmatprep.subr.mxu0 0.0
    %417 = vmatpush1.xpose.msra.mxu0 0.0
    %418 = vmatprep.subr.mxu0 0.0
    %419 = vmatpush1.xpose.msra.mxu0 0.0
    %420 = vmatprep.subr.mxu0 0.0
    %421 = vmatpush1.xpose.msra.mxu0 0.0
    %422 = vmatprep.subr.mxu0 0.0
    %423 = vmatpush1.xpose.msra.mxu0 0.0
    %424 = vmatprep.subr.mxu0 0.0
    %425 = vmatpush1.xpose.msra.mxu0 0.0
    %426 = vmatprep.subr.mxu0 0.0
    %427 = vmatpush1.xpose.msra.mxu0 0.0
    %428 = vmatprep.subr.mxu0 0.0
    %429 = vmatpush1.xpose.msra.mxu0 0.0
    %430 = vmatprep.subr.mxu0 0.0
    %431 = vmatpush1.xpose.msra.mxu0 0.0
    %432 = vmatprep.subr.mxu0 0.0
    %433 = vmatpush1.xpose.msra.mxu0 0.0
    %434 = vmatprep.subr.mxu0 0.0
    %435 = vmatpush1.xpose.msra.mxu0 0.0
    %436 = vmatprep.subr.mxu0 0.0
    %437 = vmatpush1.xpose.msra.mxu0 0.0
    %438 = vmatprep.mubr.f32.mxu0 0.0
    %439 = vmatmul.mubr.f32.gmra.mrb[0].mxu0 %v264
    %v440 = vpop.f32.mrb[0].mxu0
    %v441 = vadd.f32 0.0, %v440
    %v442 = vpop.f32.mrb[0].mxu0
    %443 = vdwg.mxu0
    %444 = vset.pattern.permute.xlu0 1
    %445 = vperm.xlu0 %444, %v257
    %v446 = vpop.permute.xlu0 %445
    %v448 = vadd.f32 %v446, %v441
    %vm449 = vcmp.gt.f32.partialorder %v448, 0.0
    %v450 = vmul.f32 %v448, 0.01
    %v451 = vsel %vm449, %v448, %v450
    %v452 = vsel %vm348, %v451, -1e+30
    %v453 = vsel %vm350, %v452, -inf
    %454 = vmax.xlane.f32.xlu0 %v453
    %v455 = vpop.xlane.xlu0 %454
    %v456 = vsub.f32 %v452, %v455
    %v457 = vmul.f32 %v456, 1.442695
    %v458 = vpow.pop %v457
    %v459 = vmul.f32 %v458, %v30
    %v460 = vsel %vm350, %v459, 0.0
    %461 = vadd.xlane.f32.xlu0 %v460
    %v462 = vpop.xlane.xlu0 %461
    %v463 = vmax.f32 %v462, 1e-30
    %v464 = vrcp.pop %v463
    %v465 = vmul.f32 %v459, %v464
    %vm466 = vcmp.ge.s32.totalorder %v261, 8
    %vm467 = vcmp.lt.s32.totalorder %v261, 16
    %vm468 = vmand %vm466, %vm467
    %v469 = vsel %vm468, 1, 0
    %v470 = vcvt.s32.f32 %v469
    %v471 = vmul.f32 %v113, %v470
    %v473 = vsel %vm350, %v465, 0
    %475 = vmatprep.subr.mxu0 0.0
    %476 = vmatpush1.msra.mxu0 %v471
    %477 = vmatprep.subr.mxu0 0.0
    %478 = vmatpush1.msra.mxu0 0.0
    %479 = vmatprep.subr.mxu0 0.0
    %480 = vmatpush1.msra.mxu0 0.0
    %481 = vmatprep.subr.mxu0 0.0
    %482 = vmatpush1.msra.mxu0 0.0
    %483 = vmatprep.subr.mxu0 0.0
    %484 = vmatpush1.msra.mxu0 0.0
    %485 = vmatprep.subr.mxu0 0.0
    %486 = vmatpush1.msra.mxu0 0.0
    %487 = vmatprep.subr.mxu0 0.0
    %488 = vmatpush1.msra.mxu0 0.0
    %489 = vmatprep.subr.mxu0 0.0
    %490 = vmatpush1.msra.mxu0 0.0
    %491 = vmatprep.subr.mxu0 0.0
    %492 = vmatpush1.msra.mxu0 0.0
    %493 = vmatprep.subr.mxu0 0.0
    %494 = vmatpush1.msra.mxu0 0.0
    %495 = vmatprep.subr.mxu0 0.0
    %496 = vmatpush1.msra.mxu0 0.0
    %497 = vmatprep.subr.mxu0 0.0
    %498 = vmatpush1.msra.mxu0 0.0
    %499 = vmatprep.subr.mxu0 0.0
    %500 = vmatpush1.msra.mxu0 0.0
    %501 = vmatprep.subr.mxu0 0.0
    %502 = vmatpush1.msra.mxu0 0.0
    %503 = vmatprep.subr.mxu0 0.0
    %504 = vmatpush1.msra.mxu0 0.0
    %505 = vmatprep.subr.mxu0 0.0
    %506 = vmatpush1.msra.mxu0 0.0
    %507 = vmatprep.subr.mxu0 0.0
    %508 = vmatpush1.msra.mxu0 0.0
    %509 = vmatprep.subr.mxu0 0.0
    %510 = vmatpush1.msra.mxu0 0.0
    %511 = vmatprep.subr.mxu0 0.0
    %512 = vmatpush1.msra.mxu0 0.0
    %513 = vmatprep.subr.mxu0 0.0
    %514 = vmatpush1.msra.mxu0 0.0
    %515 = vmatprep.subr.mxu0 0.0
    %516 = vmatpush1.msra.mxu0 0.0
    %517 = vmatprep.subr.mxu0 0.0
    %518 = vmatpush1.msra.mxu0 0.0
    %519 = vmatprep.subr.mxu0 0.0
    %520 = vmatpush1.msra.mxu0 0.0
    %521 = vmatprep.subr.mxu0 0.0
    %522 = vmatpush1.msra.mxu0 0.0
    %523 = vmatprep.subr.mxu0 0.0
    %524 = vmatpush1.msra.mxu0 0.0
    %525 = vmatprep.subr.mxu0 0.0
    %526 = vmatpush1.msra.mxu0 0.0
    %527 = vmatprep.subr.mxu0 0.0
    %528 = vmatpush1.msra.mxu0 0.0
    %529 = vmatprep.subr.mxu0 0.0
    %530 = vmatpush1.msra.mxu0 0.0
    %531 = vmatprep.subr.mxu0 0.0
    %532 = vmatpush1.msra.mxu0 0.0
    %533 = vmatprep.subr.mxu0 0.0
    %534 = vmatpush1.msra.mxu0 0.0
    %535 = vmatprep.subr.mxu0 0.0
    %536 = vmatpush1.msra.mxu0 0.0
    %537 = vmatprep.subr.mxu0 0.0
    %538 = vmatpush1.msra.mxu0 0.0
    %539 = vmatprep.mubr.f32.mxu0 0.0
    %540 = vmatmul.mubr.f32.gmra.mrb[0].mxu0 %v473
    %v541 = vpop.f32.mrb[0].mxu0
    %v542 = vadd.f32 0.0, %v541
    %v543 = vpop.f32.mrb[0].mxu0
    %544 = vdwg.mxu0
    %v546 = vsel %vm350, %v363, 0
    %548 = vmatprep.subr.mxu0 0.0
    %549 = vmatpush1.msra.mxu0 %v369
    %550 = vmatprep.subr.mxu0 0.0
    %551 = vmatpush1.msra.mxu0 0.0
    %552 = vmatprep.subr.mxu0 0.0
    %553 = vmatpush1.msra.mxu0 0.0
    %554 = vmatprep.subr.mxu0 0.0
    %555 = vmatpush1.msra.mxu0 0.0
    %556 = vmatprep.subr.mxu0 0.0
    %557 = vmatpush1.msra.mxu0 0.0
    %558 = vmatprep.subr.mxu0 0.0
    %559 = vmatpush1.msra.mxu0 0.0
    %560 = vmatprep.subr.mxu0 0.0
    %561 = vmatpush1.msra.mxu0 0.0
    %562 = vmatprep.subr.mxu0 0.0
    %563 = vmatpush1.msra.mxu0 0.0
    %564 = vmatprep.subr.mxu0 0.0
    %565 = vmatpush1.msra.mxu0 0.0
    %566 = vmatprep.subr.mxu0 0.0
    %567 = vmatpush1.msra.mxu0 0.0
    %568 = vmatprep.subr.mxu0 0.0
    %569 = vmatpush1.msra.mxu0 0.0
    %570 = vmatprep.subr.mxu0 0.0
    %571 = vmatpush1.msra.mxu0 0.0
    %572 = vmatprep.subr.mxu0 0.0
    %573 = vmatpush1.msra.mxu0 0.0
    %574 = vmatprep.subr.mxu0 0.0
    %575 = vmatpush1.msra.mxu0 0.0
    %576 = vmatprep.subr.mxu0 0.0
    %577 = vmatpush1.msra.mxu0 0.0
    %578 = vmatprep.subr.mxu0 0.0
    %579 = vmatpush1.msra.mxu0 0.0
    %580 = vmatprep.subr.mxu0 0.0
    %581 = vmatpush1.msra.mxu0 0.0
    %582 = vmatprep.subr.mxu0 0.0
    %583 = vmatpush1.msra.mxu0 0.0
    %584 = vmatprep.subr.mxu0 0.0
    %585 = vmatpush1.msra.mxu0 0.0
    %586 = vmatprep.subr.mxu0 0.0
    %587 = vmatpush1.msra.mxu0 0.0
    %588 = vmatprep.subr.mxu0 0.0
    %589 = vmatpush1.msra.mxu0 0.0
    %590 = vmatprep.subr.mxu0 0.0
    %591 = vmatpush1.msra.mxu0 0.0
    %592 = vmatprep.subr.mxu0 0.0
    %593 = vmatpush1.msra.mxu0 0.0
    %594 = vmatprep.subr.mxu0 0.0
    %595 = vmatpush1.msra.mxu0 0.0
    %596 = vmatprep.subr.mxu0 0.0
    %597 = vmatpush1.msra.mxu0 0.0
    %598 = vmatprep.subr.mxu0 0.0
    %599 = vmatpush1.msra.mxu0 0.0
    %600 = vmatprep.subr.mxu0 0.0
    %601 = vmatpush1.msra.mxu0 0.0
    %602 = vmatprep.subr.mxu0 0.0
    %603 = vmatpush1.msra.mxu0 0.0
    %604 = vmatprep.subr.mxu0 0.0
    %605 = vmatpush1.msra.mxu0 0.0
    %606 = vmatprep.subr.mxu0 0.0
    %607 = vmatpush1.msra.mxu0 0.0
    %608 = vmatprep.subr.mxu0 0.0
    %609 = vmatpush1.msra.mxu0 0.0
    %610 = vmatprep.subr.mxu0 0.0
    %611 = vmatpush1.msra.mxu0 0.0
    %612 = vmatprep.mubr.f32.mxu0 0.0
    %613 = vmatmul.mubr.f32.gmra.mrb[0].mxu0 %v546
    %v614 = vpop.f32.mrb[0].mxu0
    %v615 = vadd.f32 %v542, %v614
    %v616 = vpop.f32.mrb[0].mxu0
    %617 = vdwg.mxu0
    %618 = vrot.lane.b32.xlu0 %v187, 126
    %v619 = vpop.permute.xlu0 %618
    %v620 = vsel %vm262, %v619, 0
    %622 = vmatprep.subr.mxu0 0.0
    %623 = vmatpush1.xpose.msra.mxu0 %v620
    %624 = vmatprep.subr.mxu0 0.0
    %625 = vmatpush1.xpose.msra.mxu0 0.0
    %626 = vmatprep.subr.mxu0 0.0
    %627 = vmatpush1.xpose.msra.mxu0 0.0
    %628 = vmatprep.subr.mxu0 0.0
    %629 = vmatpush1.xpose.msra.mxu0 0.0
    %630 = vmatprep.subr.mxu0 0.0
    %631 = vmatpush1.xpose.msra.mxu0 0.0
    %632 = vmatprep.subr.mxu0 0.0
    %633 = vmatpush1.xpose.msra.mxu0 0.0
    %634 = vmatprep.subr.mxu0 0.0
    %635 = vmatpush1.xpose.msra.mxu0 0.0
    %636 = vmatprep.subr.mxu0 0.0
    %637 = vmatpush1.xpose.msra.mxu0 0.0
    %638 = vmatprep.subr.mxu0 0.0
    %639 = vmatpush1.xpose.msra.mxu0 0.0
    %640 = vmatprep.subr.mxu0 0.0
    %641 = vmatpush1.xpose.msra.mxu0 0.0
    %642 = vmatprep.subr.mxu0 0.0
    %643 = vmatpush1.xpose.msra.mxu0 0.0
    %644 = vmatprep.subr.mxu0 0.0
    %645 = vmatpush1.xpose.msra.mxu0 0.0
    %646 = vmatprep.subr.mxu0 0.0
    %647 = vmatpush1.xpose.msra.mxu0 0.0
    %648 = vmatprep.subr.mxu0 0.0
    %649 = vmatpush1.xpose.msra.mxu0 0.0
    %650 = vmatprep.subr.mxu0 0.0
    %651 = vmatpush1.xpose.msra.mxu0 0.0
    %652 = vmatprep.subr.mxu0 0.0
    %653 = vmatpush1.xpose.msra.mxu0 0.0
    %654 = vmatprep.subr.mxu0 0.0
    %655 = vmatpush1.xpose.msra.mxu0 0.0
    %656 = vmatprep.subr.mxu0 0.0
    %657 = vmatpush1.xpose.msra.mxu0 0.0
    %658 = vmatprep.subr.mxu0 0.0
    %659 = vmatpush1.xpose.msra.mxu0 0.0
    %660 = vmatprep.subr.mxu0 0.0
    %661 = vmatpush1.xpose.msra.mxu0 0.0
    %662 = vmatprep.subr.mxu0 0.0
    %663 = vmatpush1.xpose.msra.mxu0 0.0
    %664 = vmatprep.subr.mxu0 0.0
    %665 = vmatpush1.xpose.msra.mxu0 0.0
    %666 = vmatprep.subr.mxu0 0.0
    %667 = vmatpush1.xpose.msra.mxu0 0.0
    %668 = vmatprep.subr.mxu0 0.0
    %669 = vmatpush1.xpose.msra.mxu0 0.0
    %670 = vmatprep.subr.mxu0 0.0
    %671 = vmatpush1.xpose.msra.mxu0 0.0
    %672 = vmatprep.subr.mxu0 0.0
    %673 = vmatpush1.xpose.msra.mxu0 0.0
    %674 = vmatprep.subr.mxu0 0.0
    %675 = vmatpush1.xpose.msra.mxu0 0.0
    %676 = vmatprep.subr.mxu0 0.0
    %677 = vmatpush1.xpose.msra.mxu0 0.0
    %678 = vmatprep.subr.mxu0 0.0
    %679 = vmatpush1.xpose.msra.mxu0 0.0
    %680 = vmatprep.subr.mxu0 0.0
    %681 = vmatpush1.xpose.msra.mxu0 0.0
    %682 = vmatprep.subr.mxu0 0.0
    %683 = vmatpush1.xpose.msra.mxu0 0.0
    %684 = vmatprep.subr.mxu0 0.0
    %685 = vmatpush1.xpose.msra.mxu0 0.0
    %686 = vmatprep.mubr.f32.mxu0 0.0
    %687 = vmatmul.mubr.f32.gmra.mrb[0].mxu0 %v264
    %v688 = vpop.f32.mrb[0].mxu0
    %v689 = vadd.f32 0.0, %v688
    %v690 = vpop.f32.mrb[0].mxu0
    %691 = vdwg.mxu0
    %692 = vset.pattern.permute.xlu0 2
    %693 = vperm.xlu0 %692, %v257
    %v694 = vpop.permute.xlu0 %693
    %v696 = vadd.f32 %v694, %v689
    %vm697 = vcmp.gt.f32.partialorder %v696, 0.0
    %v698 = vmul.f32 %v696, 0.01
    %v699 = vsel %vm697, %v696, %v698
    %v700 = vsel %vm348, %v699, -1e+30
    %v701 = vsel %vm350, %v700, -inf
    %702 = vmax.xlane.f32.xlu0 %v701
    %v703 = vpop.xlane.xlu0 %702
    %v704 = vsub.f32 %v700, %v703
    %v705 = vmul.f32 %v704, 1.442695
    %v706 = vpow.pop %v705
    %v707 = vmul.f32 %v706, %v30
    %v708 = vsel %vm350, %v707, 0.0
    %709 = vadd.xlane.f32.xlu0 %v708
    %v710 = vpop.xlane.xlu0 %709
    %v711 = vmax.f32 %v710, 1e-30
    %v712 = vrcp.pop %v711
    %v713 = vmul.f32 %v707, %v712
    %vm714 = vcmp.ge.s32.totalorder %v261, 16
    %vm715 = vcmp.lt.s32.totalorder %v261, 24
    %vm716 = vmand %vm714, %vm715
    %v717 = vsel %vm716, 1, 0
    %v718 = vcvt.s32.f32 %v717
    %v719 = vmul.f32 %v113, %v718
    %v721 = vsel %vm350, %v713, 0
    %723 = vmatprep.subr.mxu0 0.0
    %724 = vmatpush1.msra.mxu0 %v719
    %725 = vmatprep.subr.mxu0 0.0
    %726 = vmatpush1.msra.mxu0 0.0
    %727 = vmatprep.subr.mxu0 0.0
    %728 = vmatpush1.msra.mxu0 0.0
    %729 = vmatprep.subr.mxu0 0.0
    %730 = vmatpush1.msra.mxu0 0.0
    %731 = vmatprep.subr.mxu0 0.0
    %732 = vmatpush1.msra.mxu0 0.0
    %733 = vmatprep.subr.mxu0 0.0
    %734 = vmatpush1.msra.mxu0 0.0
    %735 = vmatprep.subr.mxu0 0.0
    %736 = vmatpush1.msra.mxu0 0.0
    %737 = vmatprep.subr.mxu0 0.0
    %738 = vmatpush1.msra.mxu0 0.0
    %739 = vmatprep.subr.mxu0 0.0
    %740 = vmatpush1.msra.mxu0 0.0
    %741 = vmatprep.subr.mxu0 0.0
    %742 = vmatpush1.msra.mxu0 0.0
    %743 = vmatprep.subr.mxu0 0.0
    %744 = vmatpush1.msra.mxu0 0.0
    %745 = vmatprep.subr.mxu0 0.0
    %746 = vmatpush1.msra.mxu0 0.0
    %747 = vmatprep.subr.mxu0 0.0
    %748 = vmatpush1.msra.mxu0 0.0
    %749 = vmatprep.subr.mxu0 0.0
    %750 = vmatpush1.msra.mxu0 0.0
    %751 = vmatprep.subr.mxu0 0.0
    %752 = vmatpush1.msra.mxu0 0.0
    %753 = vmatprep.subr.mxu0 0.0
    %754 = vmatpush1.msra.mxu0 0.0
    %755 = vmatprep.subr.mxu0 0.0
    %756 = vmatpush1.msra.mxu0 0.0
    %757 = vmatprep.subr.mxu0 0.0
    %758 = vmatpush1.msra.mxu0 0.0
    %759 = vmatprep.subr.mxu0 0.0
    %760 = vmatpush1.msra.mxu0 0.0
    %761 = vmatprep.subr.mxu0 0.0
    %762 = vmatpush1.msra.mxu0 0.0
    %763 = vmatprep.subr.mxu0 0.0
    %764 = vmatpush1.msra.mxu0 0.0
    %765 = vmatprep.subr.mxu0 0.0
    %766 = vmatpush1.msra.mxu0 0.0
    %767 = vmatprep.subr.mxu0 0.0
    %768 = vmatpush1.msra.mxu0 0.0
    %769 = vmatprep.subr.mxu0 0.0
    %770 = vmatpush1.msra.mxu0 0.0
    %771 = vmatprep.subr.mxu0 0.0
    %772 = vmatpush1.msra.mxu0 0.0
    %773 = vmatprep.subr.mxu0 0.0
    %774 = vmatpush1.msra.mxu0 0.0
    %775 = vmatprep.subr.mxu0 0.0
    %776 = vmatpush1.msra.mxu0 0.0
    %777 = vmatprep.subr.mxu0 0.0
    %778 = vmatpush1.msra.mxu0 0.0
    %779 = vmatprep.subr.mxu0 0.0
    %780 = vmatpush1.msra.mxu0 0.0
    %781 = vmatprep.subr.mxu0 0.0
    %782 = vmatpush1.msra.mxu0 0.0
    %783 = vmatprep.subr.mxu0 0.0
    %784 = vmatpush1.msra.mxu0 0.0
    %785 = vmatprep.subr.mxu0 0.0
    %786 = vmatpush1.msra.mxu0 0.0
    %787 = vmatprep.mubr.f32.mxu0 0.0
    %788 = vmatmul.mubr.f32.gmra.mrb[0].mxu0 %v721
    %v789 = vpop.f32.mrb[0].mxu0
    %v790 = vadd.f32 0.0, %v789
    %v791 = vpop.f32.mrb[0].mxu0
    %792 = vdwg.mxu0
    %v793 = vadd.f32 %v615, %v790
    %794 = vrot.lane.b32.xlu0 %v187, 125
    %v795 = vpop.permute.xlu0 %794
    %v796 = vsel %vm262, %v795, 0
    %798 = vmatprep.subr.mxu0 0.0
    %799 = vmatpush1.xpose.msra.mxu0 %v796
    %800 = vmatprep.subr.mxu0 0.0
    %801 = vmatpush1.xpose.msra.mxu0 0.0
    %802 = vmatprep.subr.mxu0 0.0
    %803 = vmatpush1.xpose.msra.mxu0 0.0
    %804 = vmatprep.subr.mxu0 0.0
    %805 = vmatpush1.xpose.msra.mxu0 0.0
    %806 = vmatprep.subr.mxu0 0.0
    %807 = vmatpush1.xpose.msra.mxu0 0.0
    %808 = vmatprep.subr.mxu0 0.0
    %809 = vmatpush1.xpose.msra.mxu0 0.0
    %810 = vmatprep.subr.mxu0 0.0
    %811 = vmatpush1.xpose.msra.mxu0 0.0
    %812 = vmatprep.subr.mxu0 0.0
    %813 = vmatpush1.xpose.msra.mxu0 0.0
    %814 = vmatprep.subr.mxu0 0.0
    %815 = vmatpush1.xpose.msra.mxu0 0.0
    %816 = vmatprep.subr.mxu0 0.0
    %817 = vmatpush1.xpose.msra.mxu0 0.0
    %818 = vmatprep.subr.mxu0 0.0
    %819 = vmatpush1.xpose.msra.mxu0 0.0
    %820 = vmatprep.subr.mxu0 0.0
    %821 = vmatpush1.xpose.msra.mxu0 0.0
    %822 = vmatprep.subr.mxu0 0.0
    %823 = vmatpush1.xpose.msra.mxu0 0.0
    %824 = vmatprep.subr.mxu0 0.0
    %825 = vmatpush1.xpose.msra.mxu0 0.0
    %826 = vmatprep.subr.mxu0 0.0
    %827 = vmatpush1.xpose.msra.mxu0 0.0
    %828 = vmatprep.subr.mxu0 0.0
    %829 = vmatpush1.xpose.msra.mxu0 0.0
    %830 = vmatprep.subr.mxu0 0.0
    %831 = vmatpush1.xpose.msra.mxu0 0.0
    %832 = vmatprep.subr.mxu0 0.0
    %833 = vmatpush1.xpose.msra.mxu0 0.0
    %834 = vmatprep.subr.mxu0 0.0
    %835 = vmatpush1.xpose.msra.mxu0 0.0
    %836 = vmatprep.subr.mxu0 0.0
    %837 = vmatpush1.xpose.msra.mxu0 0.0
    %838 = vmatprep.subr.mxu0 0.0
    %839 = vmatpush1.xpose.msra.mxu0 0.0
    %840 = vmatprep.subr.mxu0 0.0
    %841 = vmatpush1.xpose.msra.mxu0 0.0
    %842 = vmatprep.subr.mxu0 0.0
    %843 = vmatpush1.xpose.msra.mxu0 0.0
    %844 = vmatprep.subr.mxu0 0.0
    %845 = vmatpush1.xpose.msra.mxu0 0.0
    %846 = vmatprep.subr.mxu0 0.0
    %847 = vmatpush1.xpose.msra.mxu0 0.0
    %848 = vmatprep.subr.mxu0 0.0
    %849 = vmatpush1.xpose.msra.mxu0 0.0
    %850 = vmatprep.subr.mxu0 0.0
    %851 = vmatpush1.xpose.msra.mxu0 0.0
    %852 = vmatprep.subr.mxu0 0.0
    %853 = vmatpush1.xpose.msra.mxu0 0.0
    %854 = vmatprep.subr.mxu0 0.0
    %855 = vmatpush1.xpose.msra.mxu0 0.0
    %856 = vmatprep.subr.mxu0 0.0
    %857 = vmatpush1.xpose.msra.mxu0 0.0
    %858 = vmatprep.subr.mxu0 0.0
    %859 = vmatpush1.xpose.msra.mxu0 0.0
    %860 = vmatprep.subr.mxu0 0.0
    %861 = vmatpush1.xpose.msra.mxu0 0.0
    %862 = vmatprep.mubr.f32.mxu0 0.0
    %863 = vmatmul.mubr.f32.gmra.mrb[0].mxu0 %v264
    %v864 = vpop.f32.mrb[0].mxu0
    %v865 = vadd.f32 0.0, %v864
    %v866 = vpop.f32.mrb[0].mxu0
    %867 = vdwg.mxu0
    %868 = vset.pattern.permute.xlu0 3
    %869 = vperm.xlu0 %868, %v257
    %v870 = vpop.permute.xlu0 %869
    %v872 = vadd.f32 %v870, %v865
    %vm873 = vcmp.gt.f32.partialorder %v872, 0.0
    %v874 = vmul.f32 %v872, 0.01
    %v875 = vsel %vm873, %v872, %v874
    %v876 = vsel %vm348, %v875, -1e+30
    %v877 = vsel %vm350, %v876, -inf
    %878 = vmax.xlane.f32.xlu0 %v877
    %v879 = vpop.xlane.xlu0 %878
    %v880 = vsub.f32 %v876, %v879
    %v881 = vmul.f32 %v880, 1.442695
    %v882 = vpow.pop %v881
    %v883 = vmul.f32 %v882, %v30
    %v884 = vsel %vm350, %v883, 0.0
    %885 = vadd.xlane.f32.xlu0 %v884
    %v886 = vpop.xlane.xlu0 %885
    %v887 = vmax.f32 %v886, 1e-30
    %v888 = vrcp.pop %v887
    %v889 = vmul.f32 %v883, %v888
    %vm890 = vcmp.ge.s32.totalorder %v261, 24
    %vm891 = vcmp.lt.s32.totalorder %v261, 32
    %vm892 = vmand %vm890, %vm891
    %v893 = vsel %vm892, 1, 0
    %v894 = vcvt.s32.f32 %v893
    %v895 = vmul.f32 %v113, %v894
    %v897 = vsel %vm350, %v889, 0
    %899 = vmatprep.subr.mxu0 0.0
    %900 = vmatpush1.msra.mxu0 %v895
    %901 = vmatprep.subr.mxu0 0.0
    %902 = vmatpush1.msra.mxu0 0.0
    %903 = vmatprep.subr.mxu0 0.0
    %904 = vmatpush1.msra.mxu0 0.0
    %905 = vmatprep.subr.mxu0 0.0
    %906 = vmatpush1.msra.mxu0 0.0
    %907 = vmatprep.subr.mxu0 0.0
    %908 = vmatpush1.msra.mxu0 0.0
    %909 = vmatprep.subr.mxu0 0.0
    %910 = vmatpush1.msra.mxu0 0.0
    %911 = vmatprep.subr.mxu0 0.0
    %912 = vmatpush1.msra.mxu0 0.0
    %913 = vmatprep.subr.mxu0 0.0
    %914 = vmatpush1.msra.mxu0 0.0
    %915 = vmatprep.subr.mxu0 0.0
    %916 = vmatpush1.msra.mxu0 0.0
    %917 = vmatprep.subr.mxu0 0.0
    %918 = vmatpush1.msra.mxu0 0.0
    %919 = vmatprep.subr.mxu0 0.0
    %920 = vmatpush1.msra.mxu0 0.0
    %921 = vmatprep.subr.mxu0 0.0
    %922 = vmatpush1.msra.mxu0 0.0
    %923 = vmatprep.subr.mxu0 0.0
    %924 = vmatpush1.msra.mxu0 0.0
    %925 = vmatprep.subr.mxu0 0.0
    %926 = vmatpush1.msra.mxu0 0.0
    %927 = vmatprep.subr.mxu0 0.0
    %928 = vmatpush1.msra.mxu0 0.0
    %929 = vmatprep.subr.mxu0 0.0
    %930 = vmatpush1.msra.mxu0 0.0
    %931 = vmatprep.subr.mxu0 0.0
    %932 = vmatpush1.msra.mxu0 0.0
    %933 = vmatprep.subr.mxu0 0.0
    %934 = vmatpush1.msra.mxu0 0.0
    %935 = vmatprep.subr.mxu0 0.0
    %936 = vmatpush1.msra.mxu0 0.0
    %937 = vmatprep.subr.mxu0 0.0
    %938 = vmatpush1.msra.mxu0 0.0
    %939 = vmatprep.subr.mxu0 0.0
    %940 = vmatpush1.msra.mxu0 0.0
    %941 = vmatprep.subr.mxu0 0.0
    %942 = vmatpush1.msra.mxu0 0.0
    %943 = vmatprep.subr.mxu0 0.0
    %944 = vmatpush1.msra.mxu0 0.0
    %945 = vmatprep.subr.mxu0 0.0
    %946 = vmatpush1.msra.mxu0 0.0
    %947 = vmatprep.subr.mxu0 0.0
    %948 = vmatpush1.msra.mxu0 0.0
    %949 = vmatprep.subr.mxu0 0.0
    %950 = vmatpush1.msra.mxu0 0.0
    %951 = vmatprep.subr.mxu0 0.0
    %952 = vmatpush1.msra.mxu0 0.0
    %953 = vmatprep.subr.mxu0 0.0
    %954 = vmatpush1.msra.mxu0 0.0
    %955 = vmatprep.subr.mxu0 0.0
    %956 = vmatpush1.msra.mxu0 0.0
    %957 = vmatprep.subr.mxu0 0.0
    %958 = vmatpush1.msra.mxu0 0.0
    %959 = vmatprep.subr.mxu0 0.0
    %960 = vmatpush1.msra.mxu0 0.0
    %961 = vmatprep.subr.mxu0 0.0
    %962 = vmatpush1.msra.mxu0 0.0
    %963 = vmatprep.mubr.f32.mxu0 0.0
    %964 = vmatmul.mubr.f32.gmra.mrb[0].mxu0 %v897
    %v965 = vpop.f32.mrb[0].mxu0
    %v966 = vadd.f32 0.0, %v965
    %v967 = vpop.f32.mrb[0].mxu0
    %968 = vdwg.mxu0
    %v969 = vadd.f32 %v793, %v966
    %vm970 = vcmp.gt.f32.partialorder %v969, 0.0
    %v971 = vmin.f32 %v969, 0.0
    %v972 = vmul.f32 %v971, 1.442695
    %v973 = vpow.pop %v972
    %v974 = vsub.f32 %v973, 1.0
    %v975 = vsel %vm970, %v969, %v974
    %v976 = vld [vmem:[%s5] sm:$0xff]
    %v977 = vld [vmem:[%s5 + $0x8] sm:$0xff]
    %v978 = vld [vmem:[%s5 + $0x10] sm:$0xff]
    %v979 = vld [vmem:[%s5 + $0x18] sm:$0xff]
    %v980 = vld [vmem:[%s6] sm:$0xff]
    %v981 = vld [vmem:[%s7] sm:$0xff]
    %v983 = vsel %vm116, %v975, 0
    %985 = vmatprep.subr.mxu0 0.0
    %986 = vmatpush1.msra.mxu0 %v976
    %987 = vmatprep.subr.mxu0 0.0
    %988 = vmatpush1.msra.mxu0 %v977
    %989 = vmatprep.subr.mxu0 0.0
    %990 = vmatpush1.msra.mxu0 %v978
    %991 = vmatprep.subr.mxu0 0.0
    %992 = vmatpush1.msra.mxu0 %v979
    %993 = vmatprep.subr.mxu0 0.0
    %994 = vmatpush1.msra.mxu0 0.0
    %995 = vmatprep.subr.mxu0 0.0
    %996 = vmatpush1.msra.mxu0 0.0
    %997 = vmatprep.subr.mxu0 0.0
    %998 = vmatpush1.msra.mxu0 0.0
    %999 = vmatprep.subr.mxu0 0.0
    %1000 = vmatpush1.msra.mxu0 0.0
    %1001 = vmatprep.subr.mxu0 0.0
    %1002 = vmatpush1.msra.mxu0 0.0
    %1003 = vmatprep.subr.mxu0 0.0
    %1004 = vmatpush1.msra.mxu0 0.0
    %1005 = vmatprep.subr.mxu0 0.0
    %1006 = vmatpush1.msra.mxu0 0.0
    %1007 = vmatprep.subr.mxu0 0.0
    %1008 = vmatpush1.msra.mxu0 0.0
    %1009 = vmatprep.subr.mxu0 0.0
    %1010 = vmatpush1.msra.mxu0 0.0
    %1011 = vmatprep.subr.mxu0 0.0
    %1012 = vmatpush1.msra.mxu0 0.0
    %1013 = vmatprep.subr.mxu0 0.0
    %1014 = vmatpush1.msra.mxu0 0.0
    %1015 = vmatprep.subr.mxu0 0.0
    %1016 = vmatpush1.msra.mxu0 0.0
    %1017 = vmatprep.subr.mxu0 0.0
    %1018 = vmatpush1.msra.mxu0 0.0
    %1019 = vmatprep.subr.mxu0 0.0
    %1020 = vmatpush1.msra.mxu0 0.0
    %1021 = vmatprep.subr.mxu0 0.0
    %1022 = vmatpush1.msra.mxu0 0.0
    %1023 = vmatprep.subr.mxu0 0.0
    %1024 = vmatpush1.msra.mxu0 0.0
    %1025 = vmatprep.subr.mxu0 0.0
    %1026 = vmatpush1.msra.mxu0 0.0
    %1027 = vmatprep.subr.mxu0 0.0
    %1028 = vmatpush1.msra.mxu0 0.0
    %1029 = vmatprep.subr.mxu0 0.0
    %1030 = vmatpush1.msra.mxu0 0.0
    %1031 = vmatprep.subr.mxu0 0.0
    %1032 = vmatpush1.msra.mxu0 0.0
    %1033 = vmatprep.subr.mxu0 0.0
    %1034 = vmatpush1.msra.mxu0 0.0
    %1035 = vmatprep.subr.mxu0 0.0
    %1036 = vmatpush1.msra.mxu0 0.0
    %1037 = vmatprep.subr.mxu0 0.0
    %1038 = vmatpush1.msra.mxu0 0.0
    %1039 = vmatprep.subr.mxu0 0.0
    %1040 = vmatpush1.msra.mxu0 0.0
    %1041 = vmatprep.subr.mxu0 0.0
    %1042 = vmatpush1.msra.mxu0 0.0
    %1043 = vmatprep.subr.mxu0 0.0
    %1044 = vmatpush1.msra.mxu0 0.0
    %1045 = vmatprep.subr.mxu0 0.0
    %1046 = vmatpush1.msra.mxu0 0.0
    %1047 = vmatprep.subr.mxu0 0.0
    %1048 = vmatpush1.msra.mxu0 0.0
    %1049 = vmatprep.mubr.f32.mxu0 0.0
    %1050 = vmatmul.mubr.f32.gmra.mrb[0].mxu0 %v983
    %v1051 = vpop.f32.mrb[0].mxu0
    %v1052 = vadd.f32 0.0, %v1051
    %v1053 = vpop.f32.mrb[0].mxu0
    %1054 = vdwg.mxu0
    %v1056 = vsel %vm350, %v1052, 0
    %1058 = vmatprep.subr.mxu0 0.0
    %1059 = vmatpush1.msra.mxu0 %v980
    %1060 = vmatprep.subr.mxu0 0.0
    %1061 = vmatpush1.msra.mxu0 0.0
    %1062 = vmatprep.subr.mxu0 0.0
    %1063 = vmatpush1.msra.mxu0 0.0
    %1064 = vmatprep.subr.mxu0 0.0
    %1065 = vmatpush1.msra.mxu0 0.0
    %1066 = vmatprep.subr.mxu0 0.0
    %1067 = vmatpush1.msra.mxu0 0.0
    %1068 = vmatprep.subr.mxu0 0.0
    %1069 = vmatpush1.msra.mxu0 0.0
    %1070 = vmatprep.subr.mxu0 0.0
    %1071 = vmatpush1.msra.mxu0 0.0
    %1072 = vmatprep.subr.mxu0 0.0
    %1073 = vmatpush1.msra.mxu0 0.0
    %1074 = vmatprep.subr.mxu0 0.0
    %1075 = vmatpush1.msra.mxu0 0.0
    %1076 = vmatprep.subr.mxu0 0.0
    %1077 = vmatpush1.msra.mxu0 0.0
    %1078 = vmatprep.subr.mxu0 0.0
    %1079 = vmatpush1.msra.mxu0 0.0
    %1080 = vmatprep.subr.mxu0 0.0
    %1081 = vmatpush1.msra.mxu0 0.0
    %1082 = vmatprep.subr.mxu0 0.0
    %1083 = vmatpush1.msra.mxu0 0.0
    %1084 = vmatprep.subr.mxu0 0.0
    %1085 = vmatpush1.msra.mxu0 0.0
    %1086 = vmatprep.subr.mxu0 0.0
    %1087 = vmatpush1.msra.mxu0 0.0
    %1088 = vmatprep.subr.mxu0 0.0
    %1089 = vmatpush1.msra.mxu0 0.0
    %1090 = vmatprep.subr.mxu0 0.0
    %1091 = vmatpush1.msra.mxu0 0.0
    %1092 = vmatprep.subr.mxu0 0.0
    %1093 = vmatpush1.msra.mxu0 0.0
    %1094 = vmatprep.subr.mxu0 0.0
    %1095 = vmatpush1.msra.mxu0 0.0
    %1096 = vmatprep.subr.mxu0 0.0
    %1097 = vmatpush1.msra.mxu0 0.0
    %1098 = vmatprep.subr.mxu0 0.0
    %1099 = vmatpush1.msra.mxu0 0.0
    %1100 = vmatprep.subr.mxu0 0.0
    %1101 = vmatpush1.msra.mxu0 0.0
    %1102 = vmatprep.subr.mxu0 0.0
    %1103 = vmatpush1.msra.mxu0 0.0
    %1104 = vmatprep.subr.mxu0 0.0
    %1105 = vmatpush1.msra.mxu0 0.0
    %1106 = vmatprep.subr.mxu0 0.0
    %1107 = vmatpush1.msra.mxu0 0.0
    %1108 = vmatprep.subr.mxu0 0.0
    %1109 = vmatpush1.msra.mxu0 0.0
    %1110 = vmatprep.subr.mxu0 0.0
    %1111 = vmatpush1.msra.mxu0 0.0
    %1112 = vmatprep.subr.mxu0 0.0
    %1113 = vmatpush1.msra.mxu0 0.0
    %1114 = vmatprep.subr.mxu0 0.0
    %1115 = vmatpush1.msra.mxu0 0.0
    %1116 = vmatprep.subr.mxu0 0.0
    %1117 = vmatpush1.msra.mxu0 0.0
    %1118 = vmatprep.subr.mxu0 0.0
    %1119 = vmatpush1.msra.mxu0 0.0
    %1120 = vmatprep.subr.mxu0 0.0
    %1121 = vmatpush1.msra.mxu0 0.0
    %1122 = vmatprep.mubr.f32.mxu0 0.0
    %1123 = vmatmul.mubr.f32.gmra.mrb[0].mxu0 %v1056
    %v1124 = vpop.f32.mrb[0].mxu0
    %v1125 = vadd.f32 0.0, %v1124
    %v1126 = vpop.f32.mrb[0].mxu0
    %1127 = vdwg.mxu0
    %1128 = vmatprep.subr.mxu0 0.0
    %1129 = vmatpush1.msra.mxu0 %v981
    %1130 = vmatprep.subr.mxu0 0.0
    %1131 = vmatpush1.msra.mxu0 0.0
    %1132 = vmatprep.subr.mxu0 0.0
    %1133 = vmatpush1.msra.mxu0 0.0
    %1134 = vmatprep.subr.mxu0 0.0
    %1135 = vmatpush1.msra.mxu0 0.0
    %1136 = vmatprep.subr.mxu0 0.0
    %1137 = vmatpush1.msra.mxu0 0.0
    %1138 = vmatprep.subr.mxu0 0.0
    %1139 = vmatpush1.msra.mxu0 0.0
    %1140 = vmatprep.subr.mxu0 0.0
    %1141 = vmatpush1.msra.mxu0 0.0
    %1142 = vmatprep.subr.mxu0 0.0
    %1143 = vmatpush1.msra.mxu0 0.0
    %1144 = vmatprep.subr.mxu0 0.0
    %1145 = vmatpush1.msra.mxu0 0.0
    %1146 = vmatprep.subr.mxu0 0.0
    %1147 = vmatpush1.msra.mxu0 0.0
    %1148 = vmatprep.subr.mxu0 0.0
    %1149 = vmatpush1.msra.mxu0 0.0
    %1150 = vmatprep.subr.mxu0 0.0
    %1151 = vmatpush1.msra.mxu0 0.0
    %1152 = vmatprep.subr.mxu0 0.0
    %1153 = vmatpush1.msra.mxu0 0.0
    %1154 = vmatprep.subr.mxu0 0.0
    %1155 = vmatpush1.msra.mxu0 0.0
    %1156 = vmatprep.subr.mxu0 0.0
    %1157 = vmatpush1.msra.mxu0 0.0
    %1158 = vmatprep.subr.mxu0 0.0
    %1159 = vmatpush1.msra.mxu0 0.0
    %1160 = vmatprep.subr.mxu0 0.0
    %1161 = vmatpush1.msra.mxu0 0.0
    %1162 = vmatprep.subr.mxu0 0.0
    %1163 = vmatpush1.msra.mxu0 0.0
    %1164 = vmatprep.subr.mxu0 0.0
    %1165 = vmatpush1.msra.mxu0 0.0
    %1166 = vmatprep.subr.mxu0 0.0
    %1167 = vmatpush1.msra.mxu0 0.0
    %1168 = vmatprep.subr.mxu0 0.0
    %1169 = vmatpush1.msra.mxu0 0.0
    %1170 = vmatprep.subr.mxu0 0.0
    %1171 = vmatpush1.msra.mxu0 0.0
    %1172 = vmatprep.subr.mxu0 0.0
    %1173 = vmatpush1.msra.mxu0 0.0
    %1174 = vmatprep.subr.mxu0 0.0
    %1175 = vmatpush1.msra.mxu0 0.0
    %1176 = vmatprep.subr.mxu0 0.0
    %1177 = vmatpush1.msra.mxu0 0.0
    %1178 = vmatprep.subr.mxu0 0.0
    %1179 = vmatpush1.msra.mxu0 0.0
    %1180 = vmatprep.subr.mxu0 0.0
    %1181 = vmatpush1.msra.mxu0 0.0
    %1182 = vmatprep.subr.mxu0 0.0
    %1183 = vmatpush1.msra.mxu0 0.0
    %1184 = vmatprep.subr.mxu0 0.0
    %1185 = vmatpush1.msra.mxu0 0.0
    %1186 = vmatprep.subr.mxu0 0.0
    %1187 = vmatpush1.msra.mxu0 0.0
    %1188 = vmatprep.subr.mxu0 0.0
    %1189 = vmatpush1.msra.mxu0 0.0
    %1190 = vmatprep.subr.mxu0 0.0
    %1191 = vmatpush1.msra.mxu0 0.0
    %1192 = vmatprep.mubr.f32.mxu0 0.0
    %1193 = vmatmul.mubr.f32.gmra.mrb[0].mxu0 %v1056
    %v1194 = vpop.f32.mrb[0].mxu0
    %v1195 = vadd.f32 0.0, %v1194
    %v1196 = vpop.f32.mrb[0].mxu0
    %1197 = vdwg.mxu0
    %v1199 = vsel %vm262, %v1125, 0
    %1201 = vmatprep.subr.mxu0 0.0
    %1202 = vmatpush1.xpose.msra.mxu0 %v1199
    %1203 = vmatprep.subr.mxu0 0.0
    %1204 = vmatpush1.xpose.msra.mxu0 0.0
    %1205 = vmatprep.subr.mxu0 0.0
    %1206 = vmatpush1.xpose.msra.mxu0 0.0
    %1207 = vmatprep.subr.mxu0 0.0
    %1208 = vmatpush1.xpose.msra.mxu0 0.0
    %1209 = vmatprep.subr.mxu0 0.0
    %1210 = vmatpush1.xpose.msra.mxu0 0.0
    %1211 = vmatprep.subr.mxu0 0.0
    %1212 = vmatpush1.xpose.msra.mxu0 0.0
    %1213 = vmatprep.subr.mxu0 0.0
    %1214 = vmatpush1.xpose.msra.mxu0 0.0
    %1215 = vmatprep.subr.mxu0 0.0
    %1216 = vmatpush1.xpose.msra.mxu0 0.0
    %1217 = vmatprep.subr.mxu0 0.0
    %1218 = vmatpush1.xpose.msra.mxu0 0.0
    %1219 = vmatprep.subr.mxu0 0.0
    %1220 = vmatpush1.xpose.msra.mxu0 0.0
    %1221 = vmatprep.subr.mxu0 0.0
    %1222 = vmatpush1.xpose.msra.mxu0 0.0
    %1223 = vmatprep.subr.mxu0 0.0
    %1224 = vmatpush1.xpose.msra.mxu0 0.0
    %1225 = vmatprep.subr.mxu0 0.0
    %1226 = vmatpush1.xpose.msra.mxu0 0.0
    %1227 = vmatprep.subr.mxu0 0.0
    %1228 = vmatpush1.xpose.msra.mxu0 0.0
    %1229 = vmatprep.subr.mxu0 0.0
    %1230 = vmatpush1.xpose.msra.mxu0 0.0
    %1231 = vmatprep.subr.mxu0 0.0
    %1232 = vmatpush1.xpose.msra.mxu0 0.0
    %1233 = vmatprep.subr.mxu0 0.0
    %1234 = vmatpush1.xpose.msra.mxu0 0.0
    %1235 = vmatprep.subr.mxu0 0.0
    %1236 = vmatpush1.xpose.msra.mxu0 0.0
    %1237 = vmatprep.subr.mxu0 0.0
    %1238 = vmatpush1.xpose.msra.mxu0 0.0
    %1239 = vmatprep.subr.mxu0 0.0
    %1240 = vmatpush1.xpose.msra.mxu0 0.0
    %1241 = vmatprep.subr.mxu0 0.0
    %1242 = vmatpush1.xpose.msra.mxu0 0.0
    %1243 = vmatprep.subr.mxu0 0.0
    %1244 = vmatpush1.xpose.msra.mxu0 0.0
    %1245 = vmatprep.subr.mxu0 0.0
    %1246 = vmatpush1.xpose.msra.mxu0 0.0
    %1247 = vmatprep.subr.mxu0 0.0
    %1248 = vmatpush1.xpose.msra.mxu0 0.0
    %1249 = vmatprep.subr.mxu0 0.0
    %1250 = vmatpush1.xpose.msra.mxu0 0.0
    %1251 = vmatprep.subr.mxu0 0.0
    %1252 = vmatpush1.xpose.msra.mxu0 0.0
    %1253 = vmatprep.subr.mxu0 0.0
    %1254 = vmatpush1.xpose.msra.mxu0 0.0
    %1255 = vmatprep.subr.mxu0 0.0
    %1256 = vmatpush1.xpose.msra.mxu0 0.0
    %1257 = vmatprep.subr.mxu0 0.0
    %1258 = vmatpush1.xpose.msra.mxu0 0.0
    %1259 = vmatprep.subr.mxu0 0.0
    %1260 = vmatpush1.xpose.msra.mxu0 0.0
    %1261 = vmatprep.subr.mxu0 0.0
    %1262 = vmatpush1.xpose.msra.mxu0 0.0
    %1263 = vmatprep.subr.mxu0 0.0
    %1264 = vmatpush1.xpose.msra.mxu0 0.0
    %1265 = vmatprep.mubr.f32.mxu0 0.0
    %1266 = vmatmul.mubr.f32.gmra.mrb[0].mxu0 %v264
    %v1267 = vpop.f32.mrb[0].mxu0
    %v1268 = vadd.f32 0.0, %v1267
    %v1269 = vpop.f32.mrb[0].mxu0
    %1270 = vdwg.mxu0
    %1272 = vset.pattern.permute.xlu0 0
    %1273 = vperm.xlu0 %1272, %v1195
    %v1274 = vpop.permute.xlu0 %1273
    %v1276 = vadd.f32 %v1274, %v1268
    %vm1277 = vcmp.gt.f32.partialorder %v1276, 0.0
    %v1278 = vmul.f32 %v1276, 0.01
    %v1279 = vsel %vm1277, %v1276, %v1278
    %v1280 = vsel %vm348, %v1279, -1e+30
    %v1281 = vsel %vm350, %v1280, -inf
    %1282 = vmax.xlane.f32.xlu0 %v1281
    %v1283 = vpop.xlane.xlu0 %1282
    %v1284 = vsub.f32 %v1280, %v1283
    %v1285 = vmul.f32 %v1284, 1.442695
    %v1286 = vpow.pop %v1285
    %v1287 = vmul.f32 %v1286, %v30
    %v1288 = vsel %vm350, %v1287, 0.0
    %1289 = vadd.xlane.f32.xlu0 %v1288
    %v1290 = vpop.xlane.xlu0 %1289
    %v1291 = vmax.f32 %v1290, 1e-30
    %v1292 = vrcp.pop %v1291
    %v1293 = vmul.f32 %v1287, %v1292
    %v1295 = vsel %vm350, %v1293, 0
    %1297 = vmatprep.subr.mxu0 0.0
    %1298 = vmatpush1.msra.mxu0 %v1052
    %1299 = vmatprep.subr.mxu0 0.0
    %1300 = vmatpush1.msra.mxu0 0.0
    %1301 = vmatprep.subr.mxu0 0.0
    %1302 = vmatpush1.msra.mxu0 0.0
    %1303 = vmatprep.subr.mxu0 0.0
    %1304 = vmatpush1.msra.mxu0 0.0
    %1305 = vmatprep.subr.mxu0 0.0
    %1306 = vmatpush1.msra.mxu0 0.0
    %1307 = vmatprep.subr.mxu0 0.0
    %1308 = vmatpush1.msra.mxu0 0.0
    %1309 = vmatprep.subr.mxu0 0.0
    %1310 = vmatpush1.msra.mxu0 0.0
    %1311 = vmatprep.subr.mxu0 0.0
    %1312 = vmatpush1.msra.mxu0 0.0
    %1313 = vmatprep.subr.mxu0 0.0
    %1314 = vmatpush1.msra.mxu0 0.0
    %1315 = vmatprep.subr.mxu0 0.0
    %1316 = vmatpush1.msra.mxu0 0.0
    %1317 = vmatprep.subr.mxu0 0.0
    %1318 = vmatpush1.msra.mxu0 0.0
    %1319 = vmatprep.subr.mxu0 0.0
    %1320 = vmatpush1.msra.mxu0 0.0
    %1321 = vmatprep.subr.mxu0 0.0
    %1322 = vmatpush1.msra.mxu0 0.0
    %1323 = vmatprep.subr.mxu0 0.0
    %1324 = vmatpush1.msra.mxu0 0.0
    %1325 = vmatprep.subr.mxu0 0.0
    %1326 = vmatpush1.msra.mxu0 0.0
    %1327 = vmatprep.subr.mxu0 0.0
    %1328 = vmatpush1.msra.mxu0 0.0
    %1329 = vmatprep.subr.mxu0 0.0
    %1330 = vmatpush1.msra.mxu0 0.0
    %1331 = vmatprep.subr.mxu0 0.0
    %1332 = vmatpush1.msra.mxu0 0.0
    %1333 = vmatprep.subr.mxu0 0.0
    %1334 = vmatpush1.msra.mxu0 0.0
    %1335 = vmatprep.subr.mxu0 0.0
    %1336 = vmatpush1.msra.mxu0 0.0
    %1337 = vmatprep.subr.mxu0 0.0
    %1338 = vmatpush1.msra.mxu0 0.0
    %1339 = vmatprep.subr.mxu0 0.0
    %1340 = vmatpush1.msra.mxu0 0.0
    %1341 = vmatprep.subr.mxu0 0.0
    %1342 = vmatpush1.msra.mxu0 0.0
    %1343 = vmatprep.subr.mxu0 0.0
    %1344 = vmatpush1.msra.mxu0 0.0
    %1345 = vmatprep.subr.mxu0 0.0
    %1346 = vmatpush1.msra.mxu0 0.0
    %1347 = vmatprep.subr.mxu0 0.0
    %1348 = vmatpush1.msra.mxu0 0.0
    %1349 = vmatprep.subr.mxu0 0.0
    %1350 = vmatpush1.msra.mxu0 0.0
    %1351 = vmatprep.subr.mxu0 0.0
    %1352 = vmatpush1.msra.mxu0 0.0
    %1353 = vmatprep.subr.mxu0 0.0
    %1354 = vmatpush1.msra.mxu0 0.0
    %1355 = vmatprep.subr.mxu0 0.0
    %1356 = vmatpush1.msra.mxu0 0.0
    %1357 = vmatprep.subr.mxu0 0.0
    %1358 = vmatpush1.msra.mxu0 0.0
    %1359 = vmatprep.subr.mxu0 0.0
    %1360 = vmatpush1.msra.mxu0 0.0
    %1361 = vmatprep.mubr.f32.mxu0 0.0
    %1362 = vmatmul.mubr.f32.gmra.mrb[0].mxu0 %v1295
    %v1363 = vpop.f32.mrb[0].mxu0
    %v1364 = vadd.f32 0.0, %v1363
    %v1365 = vpop.f32.mrb[0].mxu0
    %1366 = vdwg.mxu0
    %1367 = vst.msk [vmem:[#allocation2] sm:$0xff] %vm350, %v1364
    // Predicated region
    $region34: #{tpu_custom_call.1} parent=1 // pred_check
      _
    $region35: #{tpu_custom_call.1} parent=1 // pred_check_branch
      %1369 = sbr.rel (0) target = $region37
    $region36: #{tpu_custom_call.1} parent=1 // pred_region
      %s1371 = ssub.s32 128, 128
      %1372 = vsyncadd [#allocation3], %s1371
      %s1374 = sshll.u32 [#allocation2], 4
      %s1375 = int_to_ptr.vmem [resolvable:$true] %s1374
      %1377 = dma.vmem_to_hbm [thread:$0]  %s1375, 128, %s8, [#allocation3]
    $region37: #{tpu_custom_call.1} parent=1 // pred_fallthru
      _
    // Predicated region
    $region38: #{tpu_custom_call.1} parent=1 // pred_check
      _
    $region39: #{tpu_custom_call.1} parent=1 // pred_check_branch
      %1379 = sbr.rel (0) target = $region41
    $region40: #{tpu_custom_call.1} parent=1 // pred_region
      %1380 = dma.done [#allocation3], 128
    $region41: #{tpu_custom_call.1} parent=1 // pred_fallthru
      _
    %1381 = vsyncpa [#allocation3], 1

</llo_original>
